<compile_context>
chip_gen: v5e
topology: v5e:2x2
jax: 0.10.0
libtpu: 0.0.40
codegen_flags: <defaults>
</compile_context>

<pallas_src>
import jax
import jax.numpy as jnp
from jax import lax
from jax.experimental import pallas as pl
from jax.experimental.pallas import tpu as pltpu


# ---------------- fused Layer3Conv kernel (nb images per grid step) ----------------
def _make_layer3_kernel(H, W, nb):
    HW = H * W
    H2, W2 = H // 2, W // 2
    L = nb * HW

    def _shift(x, off):
        # out[:, p] = x[:, (p + off) mod L]; wrap garbage is killed by masks / sel below.
        if off == 0:
            return x
        return pltpu.roll(x, (-off) % L, axis=1)   # XLU lane rotate (jnp.roll semantics)

    def _conv_in_relu(x, wm, masks3):
        # x: (Cin_p, L) f32; wm: (Cout_p, 9*Cin_p) f32; masks3: (9, 1, L) f32 (hoisted).
        slabs = [_shift(x, (dy - 1) * W + (dx - 1))
                 for dy in range(3) for dx in range(3)]
        cols = (jnp.stack(slabs, axis=0) * masks3).reshape(9 * x.shape[0], L)
        y = jnp.dot(wm, cols, preferred_element_type=jnp.float32)   # one MXU matmul / layer
        # InstanceNorm2d defaults (affine=False, eps=1e-5, biased var) per image segment,
        # single-pass statistics, then ReLU. Segments are 256-lane-aligned static slices.
        segs = []
        for n in range(nb):
            ys = y[:, n * HW:(n + 1) * HW]
            mean = jnp.mean(ys, axis=1, keepdims=True)
            var = jnp.maximum(jnp.mean(ys * ys, axis=1, keepdims=True) - mean * mean, 0.0)
            segs.append(jnp.maximum((ys - mean) * lax.rsqrt(var + 1e-5), 0.0))
        return segs[0] if nb == 1 else jnp.concatenate(segs, axis=1)

    def _maxpool2x2(y, sel):
        # y: (Cout_p, L), post-ReLU (>= 0, finite). 2x2 window max via 3 lane rolls; the
        # block-diagonal 0/1 matrix sel compacts valid anchors (even row/col) per image.
        m = jnp.maximum(jnp.maximum(y, _shift(y, 1)),
                        jnp.maximum(_shift(y, W), _shift(y, W + 1)))
        return jnp.dot(m, sel, preferred_element_type=jnp.float32)  # (Cout_p, nb*H2*W2)

    def kernel(x_ref, w1_ref, w2_ref, w3_ref, masks_ref, sel_ref, o_ref):
        masks3 = masks_ref[...][:, None, :]        # reused by all 3 layers
        y = _conv_in_relu(x_ref[...].astype(jnp.float32), w1_ref[...], masks3)
        y = _conv_in_relu(y, w2_ref[...], masks3)
        y = _conv_in_relu(y, w3_ref[...], masks3)
        o_ref[...] = _maxpool2x2(y, sel_ref[...]).astype(o_ref.dtype)

    return kernel


# ---------------- wrapper helpers ----------------
def _round_up(v, m):
    return (v + m - 1) // m * m


def _pick_nb(N, hw, h2w2):
    # Images per grid step. Prefer (a) lane-dense output store (nb*h2w2 >= 128) AND
    # (b) >= 2 grid steps (v7x megacore). If both are impossible (e.g. N=2, 16x16 images)
    # prefer lane density. Blocks must stay 128-lane aligned unless they cover the full
    # array, and the 0/1 pooling constant is capped at ~1 MiB.
    def ok(d):
        if N % d:
            return False
        if d * d * hw * h2w2 * 4 > (1 << 20):
            return False
        if d != N and ((d * hw) % 128 or (d * h2w2) % 128):
            return False
        return True

    cands = [d for d in range(1, N + 1) if ok(d)]
    if not cands:
        return N                                   # single step: block == full array
    for d in cands:
        if d * h2w2 >= 128 and N // d >= 2:
            return d
    for d in cands:
        if d * h2w2 >= 128:
            return d
    return cands[-1]


# ---------------- Layer3Conv wrapper ----------------
def init_conv_params(key, cin, cout):
    kw, kb = jax.random.split(key)
    bound = 1.0 / jnp.sqrt(jnp.float32(cin * 9))
    w = jax.random.uniform(kw, (3, 3, cin, cout), jnp.float32, -bound, bound)  # HWIO
    b = jax.random.uniform(kb, (cout,), jnp.float32, -bound, bound)
    return w, b


def layer3_conv(x_nchw, params):
    # x_nchw: (N, Cin, H, W) -> (N, Cout, H//2, W//2), matching the PyTorch module.
    N, Cin, H, W = x_nchw.shape
    assert H % 2 == 0 and W % 2 == 0, "MaxPool2d(2) path assumes even H, W"
    HW, H2, W2 = H * W, H // 2, W // 2
    H2W2 = H2 * W2
    Cout = params[-1][0].shape[-1]
    Cin_p, Cout_p = _round_up(Cin, 8), _round_up(Cout, 8)

    nb = _pick_nb(N, HW, H2W2)
    steps = N // nb
    L = nb * HW

    # ---- layout plumbing (tiny; fused/constant-folded by XLA) ----
    # Input: pad channels to sublane-aligned width, channels -> sublanes,
    # (image, h, w) -> lanes: (Cin_p, N*HW).
    xf = jnp.pad(x_nchw.astype(jnp.float32),
                 ((0, 0), (0, Cin_p - Cin), (0, 0), (0, 0)))
    xT = jnp.transpose(xf.reshape(N, Cin_p, HW), (1, 0, 2)).reshape(Cin_p, N * HW)

    # Weights: HWIO (3,3,cin,cout) -> (Cout_p, 9*cin_p); column order (dy*3+dx)*cin_p + c
    # matches the im2col row order. Conv bias dropped (cancelled by InstanceNorm).
    wms = []
    for (w, _b), cin_p in zip(params, [Cin_p, Cout_p, Cout_p]):
        cin_l, cout_l = w.shape[2], w.shape[3]
        wp = jnp.pad(w.astype(jnp.float32),
                     ((0, 0), (0, 0), (0, cin_p - cin_l), (0, Cout_p - cout_l)))
        wms.append(jnp.transpose(wp.reshape(9 * cin_p, Cout_p)))      # (Cout_p, 9*cin_p)

    # Grid-invariant constants (hoisted out of the kernel; fetched to VMEM once).
    pos = jnp.arange(HW)
    hh, ww = pos // W, pos % W
    rows = []
    for dy in range(3):
        for dx in range(3):
            valid = jnp.ones((HW,), jnp.bool_)
            if dy == 0:
                valid &= hh > 0
            if dy == 2:
                valid &= hh < H - 1
            if dx == 0:
                valid &= ww > 0
            if dx == 2:
                valid &= ww < W - 1
            rows.append(valid)
    masks = jnp.tile(jnp.stack(rows).astype(jnp.float32), (1, nb))     # (9, L)

    j = jnp.arange(H2W2)
    src = 2 * (j // W2) * W + 2 * (j % W2)                             # valid pool anchors
    sel1 = (pos[:, None] == src[None, :]).astype(jnp.float32)          # (HW, H2W2)
    sel = jnp.kron(jnp.eye(nb, dtype=jnp.float32), sel1)               # (L, nb*H2W2)

    # Advisory cost so XLA schedules around the custom call.
    flops = (N * 2 * 9 * HW * (Cin_p * Cout_p + 2 * Cout_p * Cout_p)
             + steps * 2 * Cout_p * L * (nb * H2W2))
    bytes_accessed = ((xT.size + sum(w.size for w in wms) + masks.size + sel.size) * 4
                      + Cout_p * N * H2W2 * jnp.dtype(x_nchw.dtype).itemsize)
    cost = pl.CostEstimate(flops=int(flops), transcendentals=int(3 * N * Cout_p),
                           bytes_accessed=int(bytes_accessed))

    kernel = _make_layer3_kernel(H, W, nb)
    out = pl.pallas_call(
        kernel,
        out_shape=jax.ShapeDtypeStruct((Cout_p, N * H2W2), x_nchw.dtype),
        grid=(steps,),
        in_specs=[
            pl.BlockSpec((Cin_p, L), lambda s: (0, s)),                # nb images / step
            pl.BlockSpec(wms[0].shape, lambda s: (0, 0)),
            pl.BlockSpec(wms[1].shape, lambda s: (0, 0)),
            pl.BlockSpec(wms[2].shape, lambda s: (0, 0)),
            pl.BlockSpec((9, L), lambda s: (0, 0)),                    # constant masks
            pl.BlockSpec((L, nb * H2W2), lambda s: (0, 0)),            # constant selector
        ],
        out_specs=pl.BlockSpec((Cout_p, nb * H2W2), lambda s: (0, s)),  # lane-dense store
        compiler_params=pltpu.CompilerParams(
            dimension_semantics=("parallel",),
            vmem_limit_bytes=32 * 1024 * 1024),
        cost_estimate=cost,
    )(xT, *wms, masks, sel)

    # Back to NCHW (layout plumbing only; slice off padded output channels).
    out = out.reshape(Cout_p, N, H2, W2)[:Cout]
    return jnp.transpose(out, (1, 0, 2, 3))


# ---------------- pure-JAX reference (bias included) for sanity check ----------------
def layer3_conv_ref(x_nchw, params):
    x = x_nchw
    for w, b in params:
        y = lax.conv_general_dilated(x, w, (1, 1), 'SAME',
                                     dimension_numbers=('NCHW', 'HWIO', 'NCHW'))
        y = y + b[None, :, None, None]
        mean = y.mean(axis=(2, 3), keepdims=True)
        var = ((y - mean) ** 2).mean(axis=(2, 3), keepdims=True)
        x = jnp.maximum((y - mean) * lax.rsqrt(var + 1e-5), 0.0)
    return lax.reduce_window(x, -jnp.inf, lax.max, (1, 1, 2, 2), (1, 1, 2, 2), 'VALID')


if __name__ == "__main__":
    key = jax.random.PRNGKey(0)
    kx, k1, k2, k3 = jax.random.split(key, 4)

    N, Cin, Cout, H, W = 2, 4, 8, 16, 16
    x = jax.random.normal(kx, (N, Cin, H, W), jnp.float32)

    params = [
        init_conv_params(k1, Cin, Cout),    # BasicConvLayer(in, out)
        init_conv_params(k2, Cout, Cout),   # BasicConvLayer(out, out)
        init_conv_params(k3, Cout, Cout),   # BasicConvLayer(out, out)
    ]

    fwd = jax.jit(layer3_conv)
    out = jax.block_until_ready(fwd(x, params))
    assert out.shape == (N, Cout, H // 2, W // 2), out.shape

    ref = jax.block_until_ready(layer3_conv_ref(x, params))
    err = float(jnp.max(jnp.abs(out - ref)))
    assert err < 5e-4, f"max abs diff too large: {err}"

    print("KERNEL_OK")
</pallas_src>

<mosaic_0001>
module attributes {stable_mosaic.version = 11 : i64} {
  func.func @kernel(%arg0: i32, %arg1: memref<8x512xf32, #tpu.memory_space<vmem>>, %arg2: memref<8x72xf32, #tpu.memory_space<vmem>>, %arg3: memref<8x72xf32, #tpu.memory_space<vmem>>, %arg4: memref<8x72xf32, #tpu.memory_space<vmem>>, %arg5: memref<9x512xf32, #tpu.memory_space<vmem>>, %arg6: memref<512x128xf32, #tpu.memory_space<vmem>>, %arg7: memref<8x128xf32, #tpu.memory_space<vmem>>) attributes {dimension_semantics = [#tpu.dimension_semantics<parallel>], iteration_bounds = array<i64: 1>, scalar_prefetch = 0 : i64, scratch_operands = 0 : i64, tpu.core_type = #tpu.core_type<tc>, window_params = [{transform_indices = @transform_0, window_bounds = array<i64: 8, 512>}, {pipeline_mode = #tpu.pipeline_mode<synchronous>, transform_indices = @transform_1, window_bounds = array<i64: 8, 72>}, {pipeline_mode = #tpu.pipeline_mode<synchronous>, transform_indices = @transform_2, window_bounds = array<i64: 8, 72>}, {pipeline_mode = #tpu.pipeline_mode<synchronous>, transform_indices = @transform_3, window_bounds = array<i64: 8, 72>}, {pipeline_mode = #tpu.pipeline_mode<synchronous>, transform_indices = @transform_4, window_bounds = array<i64: 9, 512>}, {pipeline_mode = #tpu.pipeline_mode<synchronous>, transform_indices = @transform_5, window_bounds = array<i64: 512, 128>}, {transform_indices = @transform_6, window_bounds = array<i64: 8, 128>}]} {
    %c0 = arith.constant 0 : index
    %c0_0 = arith.constant 0 : index
    %0 = vector.load %arg5[%c0, %c0_0] : memref<9x512xf32, #tpu.memory_space<vmem>>, vector<9x512xf32>
    %1 = vector.shape_cast %0 : vector<9x512xf32> to vector<9x1x512xf32>
    %c0_1 = arith.constant 0 : index
    %c0_2 = arith.constant 0 : index
    %2 = vector.load %arg1[%c0_1, %c0_2] : memref<8x512xf32, #tpu.memory_space<vmem>>, vector<8x512xf32>
    %c0_3 = arith.constant 0 : index
    %c0_4 = arith.constant 0 : index
    %3 = vector.load %arg2[%c0_3, %c0_4] : memref<8x72xf32, #tpu.memory_space<vmem>>, vector<8x72xf32>
    %c17_i32 = arith.constant 17 : i32
    %4 = tpu.dynamic_rotate %2 by %c17_i32 dim 1 : vector<8x512xf32>, i32 -> vector<8x512xf32>
    %c16_i32 = arith.constant 16 : i32
    %5 = tpu.dynamic_rotate %2 by %c16_i32 dim 1 : vector<8x512xf32>, i32 -> vector<8x512xf32>
    %c15_i32 = arith.constant 15 : i32
    %6 = tpu.dynamic_rotate %2 by %c15_i32 dim 1 : vector<8x512xf32>, i32 -> vector<8x512xf32>
    %c1_i32 = arith.constant 1 : i32
    %7 = tpu.dynamic_rotate %2 by %c1_i32 dim 1 : vector<8x512xf32>, i32 -> vector<8x512xf32>
    %c511_i32 = arith.constant 511 : i32
    %8 = tpu.dynamic_rotate %2 by %c511_i32 dim 1 : vector<8x512xf32>, i32 -> vector<8x512xf32>
    %c497_i32 = arith.constant 497 : i32
    %9 = tpu.dynamic_rotate %2 by %c497_i32 dim 1 : vector<8x512xf32>, i32 -> vector<8x512xf32>
    %c496_i32 = arith.constant 496 : i32
    %10 = tpu.dynamic_rotate %2 by %c496_i32 dim 1 : vector<8x512xf32>, i32 -> vector<8x512xf32>
    %c495_i32 = arith.constant 495 : i32
    %11 = tpu.dynamic_rotate %2 by %c495_i32 dim 1 : vector<8x512xf32>, i32 -> vector<8x512xf32>
    %12 = vector.shape_cast %4 : vector<8x512xf32> to vector<1x8x512xf32>
    %13 = vector.shape_cast %5 : vector<8x512xf32> to vector<1x8x512xf32>
    %14 = vector.shape_cast %6 : vector<8x512xf32> to vector<1x8x512xf32>
    %15 = vector.shape_cast %7 : vector<8x512xf32> to vector<1x8x512xf32>
    %16 = vector.shape_cast %2 : vector<8x512xf32> to vector<1x8x512xf32>
    %17 = vector.shape_cast %8 : vector<8x512xf32> to vector<1x8x512xf32>
    %18 = vector.shape_cast %9 : vector<8x512xf32> to vector<1x8x512xf32>
    %19 = vector.shape_cast %10 : vector<8x512xf32> to vector<1x8x512xf32>
    %20 = vector.shape_cast %11 : vector<8x512xf32> to vector<1x8x512xf32>
    %21 = tpu.concatenate %12, %13, %14, %15, %16, %17, %18, %19, %20 in 0 : vector<1x8x512xf32>, vector<1x8x512xf32>, vector<1x8x512xf32>, vector<1x8x512xf32>, vector<1x8x512xf32>, vector<1x8x512xf32>, vector<1x8x512xf32>, vector<1x8x512xf32>, vector<1x8x512xf32> -> vector<9x8x512xf32>
    %22 = vector.broadcast %1 : vector<9x1x512xf32> to vector<9x8x512xf32>
    %23 = arith.mulf %21, %22 : vector<9x8x512xf32>
    %24 = vector.shape_cast %23 : vector<9x8x512xf32> to vector<72x512xf32>
    %cst = arith.constant dense<0.000000e+00> : vector<8x512xf32>
    %25 = tpu.matmul %3, %24, %cst {dimension_numbers = #tpu.dot_dimension_numbers<[1], [0], [0], [1], [0, 0, 1, 1], [], []>} : vector<8x72xf32>, vector<72x512xf32>, vector<8x512xf32> -> vector<8x512xf32>
    %26 = vector.extract_strided_slice %25 {offsets = [0, 0], sizes = [8, 256], strides = [1, 1]} : vector<8x512xf32> to vector<8x256xf32>
    %cst_5 = arith.constant dense<0.000000e+00> : vector<8xf32>
    %27 = vector.multi_reduction <add>, %26, %cst_5 [1] : vector<8x256xf32> to vector<8xf32>
    %28 = vector.shape_cast %27 : vector<8xf32> to vector<8x1xf32>
    %cst_6 = arith.constant 2.560000e+02 : f32
    %29 = vector.broadcast %cst_6 : f32 to vector<8x1xf32>
    %30 = arith.divf %28, %29 : vector<8x1xf32>
    %31 = arith.mulf %26, %26 : vector<8x256xf32>
    %cst_7 = arith.constant dense<0.000000e+00> : vector<8xf32>
    %32 = vector.multi_reduction <add>, %31, %cst_7 [1] : vector<8x256xf32> to vector<8xf32>
    %33 = vector.shape_cast %32 : vector<8xf32> to vector<8x1xf32>
    %cst_8 = arith.constant 2.560000e+02 : f32
    %34 = vector.broadcast %cst_8 : f32 to vector<8x1xf32>
    %35 = arith.divf %33, %34 : vector<8x1xf32>
    %36 = arith.mulf %30, %30 : vector<8x1xf32>
    %37 = arith.subf %35, %36 : vector<8x1xf32>
    %cst_9 = arith.constant 0.000000e+00 : f32
    %38 = vector.broadcast %cst_9 : f32 to vector<8x1xf32>
    %39 = arith.maximumf %37, %38 : vector<8x1xf32>
    %40 = vector.broadcast %30 : vector<8x1xf32> to vector<8x256xf32>
    %41 = arith.subf %26, %40 : vector<8x256xf32>
    %cst_10 = arith.constant 9.99999974E-6 : f32
    %42 = vector.broadcast %cst_10 : f32 to vector<8x1xf32>
    %43 = arith.addf %39, %42 : vector<8x1xf32>
    %44 = math.rsqrt %43 : vector<8x1xf32>
    %45 = vector.broadcast %44 : vector<8x1xf32> to vector<8x256xf32>
    %46 = arith.mulf %41, %45 : vector<8x256xf32>
    %cst_11 = arith.constant 0.000000e+00 : f32
    %47 = vector.broadcast %cst_11 : f32 to vector<8x256xf32>
    %48 = arith.maximumf %46, %47 : vector<8x256xf32>
    %49 = vector.extract_strided_slice %25 {offsets = [0, 256], sizes = [8, 256], strides = [1, 1]} : vector<8x512xf32> to vector<8x256xf32>
    %cst_12 = arith.constant dense<0.000000e+00> : vector<8xf32>
    %50 = vector.multi_reduction <add>, %49, %cst_12 [1] : vector<8x256xf32> to vector<8xf32>
    %51 = vector.shape_cast %50 : vector<8xf32> to vector<8x1xf32>
    %cst_13 = arith.constant 2.560000e+02 : f32
    %52 = vector.broadcast %cst_13 : f32 to vector<8x1xf32>
    %53 = arith.divf %51, %52 : vector<8x1xf32>
    %54 = arith.mulf %49, %49 : vector<8x256xf32>
    %cst_14 = arith.constant dense<0.000000e+00> : vector<8xf32>
    %55 = vector.multi_reduction <add>, %54, %cst_14 [1] : vector<8x256xf32> to vector<8xf32>
    %56 = vector.shape_cast %55 : vector<8xf32> to vector<8x1xf32>
    %cst_15 = arith.constant 2.560000e+02 : f32
    %57 = vector.broadcast %cst_15 : f32 to vector<8x1xf32>
    %58 = arith.divf %56, %57 : vector<8x1xf32>
    %59 = arith.mulf %53, %53 : vector<8x1xf32>
    %60 = arith.subf %58, %59 : vector<8x1xf32>
    %cst_16 = arith.constant 0.000000e+00 : f32
    %61 = vector.broadcast %cst_16 : f32 to vector<8x1xf32>
    %62 = arith.maximumf %60, %61 : vector<8x1xf32>
    %63 = vector.broadcast %53 : vector<8x1xf32> to vector<8x256xf32>
    %64 = arith.subf %49, %63 : vector<8x256xf32>
    %cst_17 = arith.constant 9.99999974E-6 : f32
    %65 = vector.broadcast %cst_17 : f32 to vector<8x1xf32>
    %66 = arith.addf %62, %65 : vector<8x1xf32>
    %67 = math.rsqrt %66 : vector<8x1xf32>
    %68 = vector.broadcast %67 : vector<8x1xf32> to vector<8x256xf32>
    %69 = arith.mulf %64, %68 : vector<8x256xf32>
    %cst_18 = arith.constant 0.000000e+00 : f32
    %70 = vector.broadcast %cst_18 : f32 to vector<8x256xf32>
    %71 = arith.maximumf %69, %70 : vector<8x256xf32>
    %72 = tpu.concatenate %48, %71 in 1 : vector<8x256xf32>, vector<8x256xf32> -> vector<8x512xf32>
    %c0_19 = arith.constant 0 : index
    %c0_20 = arith.constant 0 : index
    %73 = vector.load %arg3[%c0_19, %c0_20] : memref<8x72xf32, #tpu.memory_space<vmem>>, vector<8x72xf32>
    %c17_i32_21 = arith.constant 17 : i32
    %74 = tpu.dynamic_rotate %72 by %c17_i32_21 dim 1 : vector<8x512xf32>, i32 -> vector<8x512xf32>
    %c16_i32_22 = arith.constant 16 : i32
    %75 = tpu.dynamic_rotate %72 by %c16_i32_22 dim 1 : vector<8x512xf32>, i32 -> vector<8x512xf32>
    %c15_i32_23 = arith.constant 15 : i32
    %76 = tpu.dynamic_rotate %72 by %c15_i32_23 dim 1 : vector<8x512xf32>, i32 -> vector<8x512xf32>
    %c1_i32_24 = arith.constant 1 : i32
    %77 = tpu.dynamic_rotate %72 by %c1_i32_24 dim 1 : vector<8x512xf32>, i32 -> vector<8x512xf32>
    %c511_i32_25 = arith.constant 511 : i32
    %78 = tpu.dynamic_rotate %72 by %c511_i32_25 dim 1 : vector<8x512xf32>, i32 -> vector<8x512xf32>
    %c497_i32_26 = arith.constant 497 : i32
    %79 = tpu.dynamic_rotate %72 by %c497_i32_26 dim 1 : vector<8x512xf32>, i32 -> vector<8x512xf32>
    %c496_i32_27 = arith.constant 496 : i32
    %80 = tpu.dynamic_rotate %72 by %c496_i32_27 dim 1 : vector<8x512xf32>, i32 -> vector<8x512xf32>
    %c495_i32_28 = arith.constant 495 : i32
    %81 = tpu.dynamic_rotate %72 by %c495_i32_28 dim 1 : vector<8x512xf32>, i32 -> vector<8x512xf32>
    %82 = vector.shape_cast %74 : vector<8x512xf32> to vector<1x8x512xf32>
    %83 = vector.shape_cast %75 : vector<8x512xf32> to vector<1x8x512xf32>
    %84 = vector.shape_cast %76 : vector<8x512xf32> to vector<1x8x512xf32>
    %85 = vector.shape_cast %77 : vector<8x512xf32> to vector<1x8x512xf32>
    %86 = vector.shape_cast %72 : vector<8x512xf32> to vector<1x8x512xf32>
    %87 = vector.shape_cast %78 : vector<8x512xf32> to vector<1x8x512xf32>
    %88 = vector.shape_cast %79 : vector<8x512xf32> to vector<1x8x512xf32>
    %89 = vector.shape_cast %80 : vector<8x512xf32> to vector<1x8x512xf32>
    %90 = vector.shape_cast %81 : vector<8x512xf32> to vector<1x8x512xf32>
    %91 = tpu.concatenate %82, %83, %84, %85, %86, %87, %88, %89, %90 in 0 : vector<1x8x512xf32>, vector<1x8x512xf32>, vector<1x8x512xf32>, vector<1x8x512xf32>, vector<1x8x512xf32>, vector<1x8x512xf32>, vector<1x8x512xf32>, vector<1x8x512xf32>, vector<1x8x512xf32> -> vector<9x8x512xf32>
    %92 = vector.broadcast %1 : vector<9x1x512xf32> to vector<9x8x512xf32>
    %93 = arith.mulf %91, %92 : vector<9x8x512xf32>
    %94 = vector.shape_cast %93 : vector<9x8x512xf32> to vector<72x512xf32>
    %cst_29 = arith.constant dense<0.000000e+00> : vector<8x512xf32>
    %95 = tpu.matmul %73, %94, %cst_29 {dimension_numbers = #tpu.dot_dimension_numbers<[1], [0], [0], [1], [0, 0, 1, 1], [], []>} : vector<8x72xf32>, vector<72x512xf32>, vector<8x512xf32> -> vector<8x512xf32>
    %96 = vector.extract_strided_slice %95 {offsets = [0, 0], sizes = [8, 256], strides = [1, 1]} : vector<8x512xf32> to vector<8x256xf32>
    %cst_30 = arith.constant dense<0.000000e+00> : vector<8xf32>
    %97 = vector.multi_reduction <add>, %96, %cst_30 [1] : vector<8x256xf32> to vector<8xf32>
    %98 = vector.shape_cast %97 : vector<8xf32> to vector<8x1xf32>
    %cst_31 = arith.constant 2.560000e+02 : f32
    %99 = vector.broadcast %cst_31 : f32 to vector<8x1xf32>
    %100 = arith.divf %98, %99 : vector<8x1xf32>
    %101 = arith.mulf %96, %96 : vector<8x256xf32>
    %cst_32 = arith.constant dense<0.000000e+00> : vector<8xf32>
    %102 = vector.multi_reduction <add>, %101, %cst_32 [1] : vector<8x256xf32> to vector<8xf32>
    %103 = vector.shape_cast %102 : vector<8xf32> to vector<8x1xf32>
    %cst_33 = arith.constant 2.560000e+02 : f32
    %104 = vector.broadcast %cst_33 : f32 to vector<8x1xf32>
    %105 = arith.divf %103, %104 : vector<8x1xf32>
    %106 = arith.mulf %100, %100 : vector<8x1xf32>
    %107 = arith.subf %105, %106 : vector<8x1xf32>
    %cst_34 = arith.constant 0.000000e+00 : f32
    %108 = vector.broadcast %cst_34 : f32 to vector<8x1xf32>
    %109 = arith.maximumf %107, %108 : vector<8x1xf32>
    %110 = vector.broadcast %100 : vector<8x1xf32> to vector<8x256xf32>
    %111 = arith.subf %96, %110 : vector<8x256xf32>
    %cst_35 = arith.constant 9.99999974E-6 : f32
    %112 = vector.broadcast %cst_35 : f32 to vector<8x1xf32>
    %113 = arith.addf %109, %112 : vector<8x1xf32>
    %114 = math.rsqrt %113 : vector<8x1xf32>
    %115 = vector.broadcast %114 : vector<8x1xf32> to vector<8x256xf32>
    %116 = arith.mulf %111, %115 : vector<8x256xf32>
    %cst_36 = arith.constant 0.000000e+00 : f32
    %117 = vector.broadcast %cst_36 : f32 to vector<8x256xf32>
    %118 = arith.maximumf %116, %117 : vector<8x256xf32>
    %119 = vector.extract_strided_slice %95 {offsets = [0, 256], sizes = [8, 256], strides = [1, 1]} : vector<8x512xf32> to vector<8x256xf32>
    %cst_37 = arith.constant dense<0.000000e+00> : vector<8xf32>
    %120 = vector.multi_reduction <add>, %119, %cst_37 [1] : vector<8x256xf32> to vector<8xf32>
    %121 = vector.shape_cast %120 : vector<8xf32> to vector<8x1xf32>
    %cst_38 = arith.constant 2.560000e+02 : f32
    %122 = vector.broadcast %cst_38 : f32 to vector<8x1xf32>
    %123 = arith.divf %121, %122 : vector<8x1xf32>
    %124 = arith.mulf %119, %119 : vector<8x256xf32>
    %cst_39 = arith.constant dense<0.000000e+00> : vector<8xf32>
    %125 = vector.multi_reduction <add>, %124, %cst_39 [1] : vector<8x256xf32> to vector<8xf32>
    %126 = vector.shape_cast %125 : vector<8xf32> to vector<8x1xf32>
    %cst_40 = arith.constant 2.560000e+02 : f32
    %127 = vector.broadcast %cst_40 : f32 to vector<8x1xf32>
    %128 = arith.divf %126, %127 : vector<8x1xf32>
    %129 = arith.mulf %123, %123 : vector<8x1xf32>
    %130 = arith.subf %128, %129 : vector<8x1xf32>
    %cst_41 = arith.constant 0.000000e+00 : f32
    %131 = vector.broadcast %cst_41 : f32 to vector<8x1xf32>
    %132 = arith.maximumf %130, %131 : vector<8x1xf32>
    %133 = vector.broadcast %123 : vector<8x1xf32> to vector<8x256xf32>
    %134 = arith.subf %119, %133 : vector<8x256xf32>
    %cst_42 = arith.constant 9.99999974E-6 : f32
    %135 = vector.broadcast %cst_42 : f32 to vector<8x1xf32>
    %136 = arith.addf %132, %135 : vector<8x1xf32>
    %137 = math.rsqrt %136 : vector<8x1xf32>
    %138 = vector.broadcast %137 : vector<8x1xf32> to vector<8x256xf32>
    %139 = arith.mulf %134, %138 : vector<8x256xf32>
    %cst_43 = arith.constant 0.000000e+00 : f32
    %140 = vector.broadcast %cst_43 : f32 to vector<8x256xf32>
    %141 = arith.maximumf %139, %140 : vector<8x256xf32>
    %142 = tpu.concatenate %118, %141 in 1 : vector<8x256xf32>, vector<8x256xf32> -> vector<8x512xf32>
    %c0_44 = arith.constant 0 : index
    %c0_45 = arith.constant 0 : index
    %143 = vector.load %arg4[%c0_44, %c0_45] : memref<8x72xf32, #tpu.memory_space<vmem>>, vector<8x72xf32>
    %c17_i32_46 = arith.constant 17 : i32
    %144 = tpu.dynamic_rotate %142 by %c17_i32_46 dim 1 : vector<8x512xf32>, i32 -> vector<8x512xf32>
    %c16_i32_47 = arith.constant 16 : i32
    %145 = tpu.dynamic_rotate %142 by %c16_i32_47 dim 1 : vector<8x512xf32>, i32 -> vector<8x512xf32>
    %c15_i32_48 = arith.constant 15 : i32
    %146 = tpu.dynamic_rotate %142 by %c15_i32_48 dim 1 : vector<8x512xf32>, i32 -> vector<8x512xf32>
    %c1_i32_49 = arith.constant 1 : i32
    %147 = tpu.dynamic_rotate %142 by %c1_i32_49 dim 1 : vector<8x512xf32>, i32 -> vector<8x512xf32>
    %c511_i32_50 = arith.constant 511 : i32
    %148 = tpu.dynamic_rotate %142 by %c511_i32_50 dim 1 : vector<8x512xf32>, i32 -> vector<8x512xf32>
    %c497_i32_51 = arith.constant 497 : i32
    %149 = tpu.dynamic_rotate %142 by %c497_i32_51 dim 1 : vector<8x512xf32>, i32 -> vector<8x512xf32>
    %c496_i32_52 = arith.constant 496 : i32
    %150 = tpu.dynamic_rotate %142 by %c496_i32_52 dim 1 : vector<8x512xf32>, i32 -> vector<8x512xf32>
    %c495_i32_53 = arith.constant 495 : i32
    %151 = tpu.dynamic_rotate %142 by %c495_i32_53 dim 1 : vector<8x512xf32>, i32 -> vector<8x512xf32>
    %152 = vector.shape_cast %144 : vector<8x512xf32> to vector<1x8x512xf32>
    %153 = vector.shape_cast %145 : vector<8x512xf32> to vector<1x8x512xf32>
    %154 = vector.shape_cast %146 : vector<8x512xf32> to vector<1x8x512xf32>
    %155 = vector.shape_cast %147 : vector<8x512xf32> to vector<1x8x512xf32>
    %156 = vector.shape_cast %142 : vector<8x512xf32> to vector<1x8x512xf32>
    %157 = vector.shape_cast %148 : vector<8x512xf32> to vector<1x8x512xf32>
    %158 = vector.shape_cast %149 : vector<8x512xf32> to vector<1x8x512xf32>
    %159 = vector.shape_cast %150 : vector<8x512xf32> to vector<1x8x512xf32>
    %160 = vector.shape_cast %151 : vector<8x512xf32> to vector<1x8x512xf32>
    %161 = tpu.concatenate %152, %153, %154, %155, %156, %157, %158, %159, %160 in 0 : vector<1x8x512xf32>, vector<1x8x512xf32>, vector<1x8x512xf32>, vector<1x8x512xf32>, vector<1x8x512xf32>, vector<1x8x512xf32>, vector<1x8x512xf32>, vector<1x8x512xf32>, vector<1x8x512xf32> -> vector<9x8x512xf32>
    %162 = vector.broadcast %1 : vector<9x1x512xf32> to vector<9x8x512xf32>
    %163 = arith.mulf %161, %162 : vector<9x8x512xf32>
    %164 = vector.shape_cast %163 : vector<9x8x512xf32> to vector<72x512xf32>
    %cst_54 = arith.constant dense<0.000000e+00> : vector<8x512xf32>
    %165 = tpu.matmul %143, %164, %cst_54 {dimension_numbers = #tpu.dot_dimension_numbers<[1], [0], [0], [1], [0, 0, 1, 1], [], []>} : vector<8x72xf32>, vector<72x512xf32>, vector<8x512xf32> -> vector<8x512xf32>
    %166 = vector.extract_strided_slice %165 {offsets = [0, 0], sizes = [8, 256], strides = [1, 1]} : vector<8x512xf32> to vector<8x256xf32>
    %cst_55 = arith.constant dense<0.000000e+00> : vector<8xf32>
    %167 = vector.multi_reduction <add>, %166, %cst_55 [1] : vector<8x256xf32> to vector<8xf32>
    %168 = vector.shape_cast %167 : vector<8xf32> to vector<8x1xf32>
    %cst_56 = arith.constant 2.560000e+02 : f32
    %169 = vector.broadcast %cst_56 : f32 to vector<8x1xf32>
    %170 = arith.divf %168, %169 : vector<8x1xf32>
    %171 = arith.mulf %166, %166 : vector<8x256xf32>
    %cst_57 = arith.constant dense<0.000000e+00> : vector<8xf32>
    %172 = vector.multi_reduction <add>, %171, %cst_57 [1] : vector<8x256xf32> to vector<8xf32>
    %173 = vector.shape_cast %172 : vector<8xf32> to vector<8x1xf32>
    %cst_58 = arith.constant 2.560000e+02 : f32
    %174 = vector.broadcast %cst_58 : f32 to vector<8x1xf32>
    %175 = arith.divf %173, %174 : vector<8x1xf32>
    %176 = arith.mulf %170, %170 : vector<8x1xf32>
    %177 = arith.subf %175, %176 : vector<8x1xf32>
    %cst_59 = arith.constant 0.000000e+00 : f32
    %178 = vector.broadcast %cst_59 : f32 to vector<8x1xf32>
    %179 = arith.maximumf %177, %178 : vector<8x1xf32>
    %180 = vector.broadcast %170 : vector<8x1xf32> to vector<8x256xf32>
    %181 = arith.subf %166, %180 : vector<8x256xf32>
    %cst_60 = arith.constant 9.99999974E-6 : f32
    %182 = vector.broadcast %cst_60 : f32 to vector<8x1xf32>
    %183 = arith.addf %179, %182 : vector<8x1xf32>
    %184 = math.rsqrt %183 : vector<8x1xf32>
    %185 = vector.broadcast %184 : vector<8x1xf32> to vector<8x256xf32>
    %186 = arith.mulf %181, %185 : vector<8x256xf32>
    %cst_61 = arith.constant 0.000000e+00 : f32
    %187 = vector.broadcast %cst_61 : f32 to vector<8x256xf32>
    %188 = arith.maximumf %186, %187 : vector<8x256xf32>
    %189 = vector.extract_strided_slice %165 {offsets = [0, 256], sizes = [8, 256], strides = [1, 1]} : vector<8x512xf32> to vector<8x256xf32>
    %cst_62 = arith.constant dense<0.000000e+00> : vector<8xf32>
    %190 = vector.multi_reduction <add>, %189, %cst_62 [1] : vector<8x256xf32> to vector<8xf32>
    %191 = vector.shape_cast %190 : vector<8xf32> to vector<8x1xf32>
    %cst_63 = arith.constant 2.560000e+02 : f32
    %192 = vector.broadcast %cst_63 : f32 to vector<8x1xf32>
    %193 = arith.divf %191, %192 : vector<8x1xf32>
    %194 = arith.mulf %189, %189 : vector<8x256xf32>
    %cst_64 = arith.constant dense<0.000000e+00> : vector<8xf32>
    %195 = vector.multi_reduction <add>, %194, %cst_64 [1] : vector<8x256xf32> to vector<8xf32>
    %196 = vector.shape_cast %195 : vector<8xf32> to vector<8x1xf32>
    %cst_65 = arith.constant 2.560000e+02 : f32
    %197 = vector.broadcast %cst_65 : f32 to vector<8x1xf32>
    %198 = arith.divf %196, %197 : vector<8x1xf32>
    %199 = arith.mulf %193, %193 : vector<8x1xf32>
    %200 = arith.subf %198, %199 : vector<8x1xf32>
    %cst_66 = arith.constant 0.000000e+00 : f32
    %201 = vector.broadcast %cst_66 : f32 to vector<8x1xf32>
    %202 = arith.maximumf %200, %201 : vector<8x1xf32>
    %203 = vector.broadcast %193 : vector<8x1xf32> to vector<8x256xf32>
    %204 = arith.subf %189, %203 : vector<8x256xf32>
    %cst_67 = arith.constant 9.99999974E-6 : f32
    %205 = vector.broadcast %cst_67 : f32 to vector<8x1xf32>
    %206 = arith.addf %202, %205 : vector<8x1xf32>
    %207 = math.rsqrt %206 : vector<8x1xf32>
    %208 = vector.broadcast %207 : vector<8x1xf32> to vector<8x256xf32>
    %209 = arith.mulf %204, %208 : vector<8x256xf32>
    %cst_68 = arith.constant 0.000000e+00 : f32
    %210 = vector.broadcast %cst_68 : f32 to vector<8x256xf32>
    %211 = arith.maximumf %209, %210 : vector<8x256xf32>
    %212 = tpu.concatenate %188, %211 in 1 : vector<8x256xf32>, vector<8x256xf32> -> vector<8x512xf32>
    %c0_69 = arith.constant 0 : index
    %c0_70 = arith.constant 0 : index
    %213 = vector.load %arg6[%c0_69, %c0_70] : memref<512x128xf32, #tpu.memory_space<vmem>>, vector<512x128xf32>
    %c511_i32_71 = arith.constant 511 : i32
    %214 = tpu.dynamic_rotate %212 by %c511_i32_71 dim 1 : vector<8x512xf32>, i32 -> vector<8x512xf32>
    %215 = arith.maximumf %212, %214 : vector<8x512xf32>
    %c496_i32_72 = arith.constant 496 : i32
    %216 = tpu.dynamic_rotate %212 by %c496_i32_72 dim 1 : vector<8x512xf32>, i32 -> vector<8x512xf32>
    %c495_i32_73 = arith.constant 495 : i32
    %217 = tpu.dynamic_rotate %212 by %c495_i32_73 dim 1 : vector<8x512xf32>, i32 -> vector<8x512xf32>
    %218 = arith.maximumf %216, %217 : vector<8x512xf32>
    %219 = arith.maximumf %215, %218 : vector<8x512xf32>
    %cst_74 = arith.constant dense<0.000000e+00> : vector<8x128xf32>
    %220 = tpu.matmul %219, %213, %cst_74 {dimension_numbers = #tpu.dot_dimension_numbers<[1], [0], [0], [1], [0, 0, 1, 1], [], []>} : vector<8x512xf32>, vector<512x128xf32>, vector<8x128xf32> -> vector<8x128xf32>
    %c0_75 = arith.constant 0 : index
    %c0_76 = arith.constant 0 : index
    %221 = vector.load %arg7[%c0_75, %c0_76] : memref<8x128xf32, #tpu.memory_space<vmem>>, vector<8x128xf32>
    tpu.vector_store %arg7[%c0_75, %c0_76], %220 {strides = array<i32>} : memref<8x128xf32, #tpu.memory_space<vmem>>, vector<8x128xf32>,
    return
  }
  func.func @transform_0(%arg0: i32) -> (i32, i32) {
    %c0_i32 = arith.constant 0 : i32
    %c0_i32_0 = arith.constant 0 : i32
    return %c0_i32, %arg0 : i32, i32
  }
  func.func @transform_1(%arg0: i32) -> (i32, i32) {
    %c0_i32 = arith.constant 0 : i32
    %c0_i32_0 = arith.constant 0 : i32
    %c0_i32_1 = arith.constant 0 : i32
    return %c0_i32, %c0_i32_0 : i32, i32
  }
  func.func @transform_2(%arg0: i32) -> (i32, i32) {
    %c0_i32 = arith.constant 0 : i32
    %c0_i32_0 = arith.constant 0 : i32
    %c0_i32_1 = arith.constant 0 : i32
    return %c0_i32, %c0_i32_0 : i32, i32
  }
  func.func @transform_3(%arg0: i32) -> (i32, i32) {
    %c0_i32 = arith.constant 0 : i32
    %c0_i32_0 = arith.constant 0 : i32
    %c0_i32_1 = arith.constant 0 : i32
    return %c0_i32, %c0_i32_0 : i32, i32
  }
  func.func @transform_4(%arg0: i32) -> (i32, i32) {
    %c0_i32 = arith.constant 0 : i32
    %c0_i32_0 = arith.constant 0 : i32
    %c0_i32_1 = arith.constant 0 : i32
    return %c0_i32, %c0_i32_0 : i32, i32
  }
  func.func @transform_5(%arg0: i32) -> (i32, i32) {
    %c0_i32 = arith.constant 0 : i32
    %c0_i32_0 = arith.constant 0 : i32
    %c0_i32_1 = arith.constant 0 : i32
    return %c0_i32, %c0_i32_0 : i32, i32
  }
  func.func @transform_6(%arg0: i32) -> (i32, i32) {
    %c0_i32 = arith.constant 0 : i32
    %c0_i32_0 = arith.constant 0 : i32
    return %c0_i32, %arg0 : i32, i32
  }
}

</mosaic_0001>

<llo_original>
// kernel: layer3_conv.1
$region0: #{layer3_conv.1}
  #allocation0 [shape = 'u32[]', space=smem, size = 0x4, offset = 0x4, fixed_abs, tag = 'smem constant byte address 0x4 - core index']
  #allocation1 [shape = 'u32[72,128]{1,0:T(1,128)}', space=vmem, size = 0x9000, scoped, tag = 'internal scratch']
  %s0 = inlined_call_operand.vmem [shape: f32[8,512], index: 0, kind: input, shape index: {}]
  %s1 = inlined_call_operand.vmem [shape: f32[8,72], index: 1, kind: input, shape index: {}]
  %s2 = inlined_call_operand.vmem [shape: f32[8,72], index: 2, kind: input, shape index: {}]
  %s3 = inlined_call_operand.vmem [shape: f32[8,72], index: 3, kind: input, shape index: {}]
  %s4 = inlined_call_operand.vmem [shape: f32[9,512], index: 4, kind: input, shape index: {}]
  %s5 = inlined_call_operand.vmem [shape: f32[512,128], index: 5, kind: input, shape index: {}]
  %s6 = inlined_call_operand.vmem [shape: f32[8,128], index: 6, kind: output, shape index: {}]
  %s7 = sld [smem:[#allocation0]]
  $region34: #{layer3_conv.1} parent=0
    _
  %s9 = ssub.s32 1, %s7
  %s10 = scalar_select 0, %s9, %s7
  // Predicated region
  $region2: #{layer3_conv.1} parent=0 // pred_check
    _
  $region3: #{layer3_conv.1} parent=0 // pred_check_branch
    %12 = sbr.rel (0) target = $region5
  $region4: #{layer3_conv.1} parent=0 // pred_region
    _
  $region5: #{layer3_conv.1} parent=0 // pred_fallthru
    _
  // Predicated region
  $region6: #{layer3_conv.1} parent=0 // pred_check
    _
  $region7: #{layer3_conv.1} parent=0 // pred_check_branch
    %14 = sbr.rel (0) target = $region9
  $region8: #{layer3_conv.1} parent=0 // pred_region
    _
  $region9: #{layer3_conv.1} parent=0 // pred_fallthru
    _
  // Predicated region
  $region10: #{layer3_conv.1} parent=0 // pred_check
    _
  $region11: #{layer3_conv.1} parent=0 // pred_check_branch
    %16 = sbr.rel (0) target = $region13
  $region12: #{layer3_conv.1} parent=0 // pred_region
    _
  $region13: #{layer3_conv.1} parent=0 // pred_fallthru
    _
  // Predicated region
  $region14: #{layer3_conv.1} parent=0 // pred_check
    _
  $region15: #{layer3_conv.1} parent=0 // pred_check_branch
    %18 = sbr.rel (0) target = $region17
  $region16: #{layer3_conv.1} parent=0 // pred_region
    _
  $region17: #{layer3_conv.1} parent=0 // pred_fallthru
    _
  // Predicated region
  $region18: #{layer3_conv.1} parent=0 // pred_check
    _
  $region19: #{layer3_conv.1} parent=0 // pred_check_branch
    %20 = sbr.rel (0) target = $region21
  $region20: #{layer3_conv.1} parent=0 // pred_region
    _
  $region21: #{layer3_conv.1} parent=0 // pred_fallthru
    _
  // Predicated region
  $region22: #{layer3_conv.1} parent=0 // pred_check
    _
  $region23: #{layer3_conv.1} parent=0 // pred_check_branch
    %22 = sbr.rel (0) target = $region25
  $region24: #{layer3_conv.1} parent=0 // pred_region
    _
  $region25: #{layer3_conv.1} parent=0 // pred_fallthru
    _
  %v23 = vld [vmem:[%s4] sm:$0xff]
  %v24 = vld [vmem:[%s4 + $0x8] sm:$0xff]
  %v25 = vld [vmem:[%s4 + $0x10] sm:$0xff]
  %v26 = vld [vmem:[%s4 + $0x18] sm:$0xff]
  %v27 = vld [vmem:[%s4 + $0x20] sm:$0x1]
  %v28 = vld [vmem:[%s4 + $0x28] sm:$0x1]
  %v29 = vld [vmem:[%s4 + $0x30] sm:$0x1]
  %v30 = vld [vmem:[%s4 + $0x38] sm:$0x1]
  %v39 = vrot.slane %v24, 7
  %v40 = vrot.slane %v25, 6
  %v41 = vrot.slane %v26, 5
  %v42 = vrot.slane %v28, 7
  %v43 = vrot.slane %v29, 6
  %v44 = vrot.slane %v30, 5
  %vm45 = vcmask 1040384
  %v46 = vsel %vm45, %v23, %v39
  %vm47 = vcmask 1042434
  %v48 = vsel %vm47, %v40, %v41
  %vm49 = vcmask 1041408
  %v50 = vsel %vm49, %v46, %v48
  %vm51 = vcmask 1041409
  %v52 = vsel %vm51, %v23, %v39
  %vm53 = vcmask 1043459
  %v54 = vsel %vm53, %v40, %v41
  %vm55 = vcmask 1042433
  %v56 = vsel %vm55, %v52, %v54
  %v57 = vrot.slane %v56, 1
  %v58 = vsel %vm47, %v23, %v39
  %vm59 = vcmask 1044484
  %v60 = vsel %vm59, %v40, %v41
  %vm61 = vcmask 1043458
  %v62 = vsel %vm61, %v58, %v60
  %v63 = vrot.slane %v62, 2
  %v64 = vsel %vm53, %v23, %v39
  %vm65 = vcmask 1045509
  %v66 = vsel %vm65, %v40, %v41
  %vm67 = vcmask 1044483
  %v68 = vsel %vm67, %v64, %v66
  %v69 = vrot.slane %v68, 3
  %v70 = vsel %vm59, %v23, %v39
  %vm71 = vcmask 1046534
  %v72 = vsel %vm71, %v40, %v41
  %vm73 = vcmask 1045508
  %v74 = vsel %vm73, %v70, %v72
  %v75 = vrot.slane %v74, 4
  %v76 = vsel %vm65, %v23, %v39
  %vm77 = vcmask 1046528
  %v78 = vsel %vm77, %v41, %v40
  %vm79 = vcmask 1046533
  %v80 = vsel %vm79, %v76, %v78
  %v81 = vrot.slane %v80, 5
  %v82 = vsel %vm71, %v23, %v39
  %v83 = vsel %vm45, %v40, %v41
  %vm84 = vcmask 1045504
  %v85 = vsel %vm84, %v83, %v82
  %v86 = vrot.slane %v85, 6
  %v87 = vsel %vm77, %v39, %v23
  %v88 = vsel %vm51, %v40, %v41
  %vm89 = vcmask 1046529
  %v90 = vsel %vm89, %v88, %v87
  %v91 = vrot.slane %v90, 7
  %v92 = vsel %vm45, %v27, %v42
  %v93 = vsel %vm47, %v43, %v44
  %v94 = vsel %vm49, %v92, %v93
  %v95 = vld [vmem:[%s0] sm:$0xff]
  %v96 = vld [vmem:[%s0 + $0x8] sm:$0xff]
  %v97 = vld [vmem:[%s0 + $0x10] sm:$0xff]
  %v98 = vld [vmem:[%s0 + $0x18] sm:$0xff]
  %v99 = vld [vmem:[%s1] sm:$0xff]
  %100 = vrot.lane.b32.xlu0 %v95, 17
  %v101 = vpop.permute.xlu0 %100
  %102 = vrot.lane.b32.xlu0 %v96, 17
  %v103 = vpop.permute.xlu0 %102
  %104 = vrot.lane.b32.xlu0 %v97, 17
  %v105 = vpop.permute.xlu0 %104
  %106 = vrot.lane.b32.xlu0 %v98, 17
  %v107 = vpop.permute.xlu0 %106
  %v108 = vlaneseq
  %v109 = vand.u32 %v108, 127
  %vm110 = vcmp.lt.s32.totalorder %v109, 17
  %v111 = vsel %vm110, %v105, %v107
  %v112 = vsel %vm110, %v103, %v105
  %v113 = vsel %vm110, %v101, %v103
  %v114 = vsel %vm110, %v107, %v101
  %115 = vrot.lane.b32.xlu0 %v95, 16
  %v116 = vpop.permute.xlu0 %115
  %117 = vrot.lane.b32.xlu0 %v96, 16
  %v118 = vpop.permute.xlu0 %117
  %119 = vrot.lane.b32.xlu0 %v97, 16
  %v120 = vpop.permute.xlu0 %119
  %121 = vrot.lane.b32.xlu0 %v98, 16
  %v122 = vpop.permute.xlu0 %121
  %vm123 = vcmp.lt.s32.totalorder %v109, 16
  %v124 = vsel %vm123, %v120, %v122
  %v125 = vsel %vm123, %v118, %v120
  %v126 = vsel %vm123, %v116, %v118
  %v127 = vsel %vm123, %v122, %v116
  %128 = vrot.lane.b32.xlu0 %v95, 15
  %v129 = vpop.permute.xlu0 %128
  %130 = vrot.lane.b32.xlu0 %v96, 15
  %v131 = vpop.permute.xlu0 %130
  %132 = vrot.lane.b32.xlu0 %v97, 15
  %v133 = vpop.permute.xlu0 %132
  %134 = vrot.lane.b32.xlu0 %v98, 15
  %v135 = vpop.permute.xlu0 %134
  %vm136 = vcmp.lt.s32.totalorder %v109, 15
  %v137 = vsel %vm136, %v133, %v135
  %v138 = vsel %vm136, %v131, %v133
  %v139 = vsel %vm136, %v129, %v131
  %v140 = vsel %vm136, %v135, %v129
  %141 = vrot.lane.b32.xlu0 %v95, 1
  %v142 = vpop.permute.xlu0 %141
  %143 = vrot.lane.b32.xlu0 %v96, 1
  %v144 = vpop.permute.xlu0 %143
  %145 = vrot.lane.b32.xlu0 %v97, 1
  %v146 = vpop.permute.xlu0 %145
  %147 = vrot.lane.b32.xlu0 %v98, 1
  %v148 = vpop.permute.xlu0 %147
  %vm149 = vcmp.lt.s32.totalorder %v109, 1
  %v150 = vsel %vm149, %v146, %v148
  %v151 = vsel %vm149, %v144, %v146
  %v152 = vsel %vm149, %v142, %v144
  %v153 = vsel %vm149, %v148, %v142
  %154 = vrot.lane.b32.xlu0 %v95, 127
  %v155 = vpop.permute.xlu0 %154
  %156 = vrot.lane.b32.xlu0 %v96, 127
  %v157 = vpop.permute.xlu0 %156
  %158 = vrot.lane.b32.xlu0 %v97, 127
  %v159 = vpop.permute.xlu0 %158
  %160 = vrot.lane.b32.xlu0 %v98, 127
  %v161 = vpop.permute.xlu0 %160
  %vm162 = vcmp.lt.s32.totalorder %v109, 127
  %v163 = vsel %vm162, %v159, %v161
  %v164 = vsel %vm162, %v157, %v159
  %v165 = vsel %vm162, %v155, %v157
  %v166 = vsel %vm162, %v161, %v155
  %167 = vrot.lane.b32.xlu0 %v95, 113
  %v168 = vpop.permute.xlu0 %167
  %169 = vrot.lane.b32.xlu0 %v96, 113
  %v170 = vpop.permute.xlu0 %169
  %171 = vrot.lane.b32.xlu0 %v97, 113
  %v172 = vpop.permute.xlu0 %171
  %173 = vrot.lane.b32.xlu0 %v98, 113
  %v174 = vpop.permute.xlu0 %173
  %vm175 = vcmp.lt.s32.totalorder %v109, 113
  %v176 = vsel %vm175, %v172, %v174
  %v177 = vsel %vm175, %v170, %v172
  %v178 = vsel %vm175, %v168, %v170
  %v179 = vsel %vm175, %v174, %v168
  %180 = vrot.lane.b32.xlu0 %v95, 112
  %v181 = vpop.permute.xlu0 %180
  %182 = vrot.lane.b32.xlu0 %v96, 112
  %v183 = vpop.permute.xlu0 %182
  %184 = vrot.lane.b32.xlu0 %v97, 112
  %v185 = vpop.permute.xlu0 %184
  %186 = vrot.lane.b32.xlu0 %v98, 112
  %v187 = vpop.permute.xlu0 %186
  %vm188 = vcmp.lt.s32.totalorder %v109, 112
  %v189 = vsel %vm188, %v185, %v187
  %v190 = vsel %vm188, %v183, %v185
  %v191 = vsel %vm188, %v181, %v183
  %v192 = vsel %vm188, %v187, %v181
  %193 = vrot.lane.b32.xlu0 %v95, 111
  %v194 = vpop.permute.xlu0 %193
  %195 = vrot.lane.b32.xlu0 %v96, 111
  %v196 = vpop.permute.xlu0 %195
  %197 = vrot.lane.b32.xlu0 %v97, 111
  %v198 = vpop.permute.xlu0 %197
  %199 = vrot.lane.b32.xlu0 %v98, 111
  %v200 = vpop.permute.xlu0 %199
  %vm201 = vcmp.lt.s32.totalorder %v109, 111
  %v202 = vsel %vm201, %v198, %v200
  %v203 = vsel %vm201, %v196, %v198
  %v204 = vsel %vm201, %v194, %v196
  %v205 = vsel %vm201, %v200, %v194
  %v206 = vperm.slane %v50, 0
  %v207 = vperm.slane %v50, 1
  %v208 = vperm.slane %v50, 2
  %v209 = vperm.slane %v50, 3
  %v210 = vperm.slane %v57, 0
  %v211 = vperm.slane %v57, 1
  %v212 = vperm.slane %v57, 2
  %v213 = vperm.slane %v57, 3
  %v214 = vperm.slane %v63, 0
  %v215 = vperm.slane %v63, 1
  %v216 = vperm.slane %v63, 2
  %v217 = vperm.slane %v63, 3
  %v218 = vperm.slane %v69, 0
  %v219 = vperm.slane %v69, 1
  %v220 = vperm.slane %v69, 2
  %v221 = vperm.slane %v69, 3
  %v222 = vperm.slane %v75, 0
  %v223 = vperm.slane %v75, 1
  %v224 = vperm.slane %v75, 2
  %v225 = vperm.slane %v75, 3
  %v226 = vperm.slane %v81, 0
  %v227 = vperm.slane %v81, 1
  %v228 = vperm.slane %v81, 2
  %v229 = vperm.slane %v81, 3
  %v230 = vperm.slane %v86, 0
  %v231 = vperm.slane %v86, 1
  %v232 = vperm.slane %v86, 2
  %v233 = vperm.slane %v86, 3
  %v234 = vperm.slane %v91, 0
  %v235 = vperm.slane %v91, 1
  %v236 = vperm.slane %v91, 2
  %v237 = vperm.slane %v91, 3
  %v238 = vperm.slane %v94, 0
  %v239 = vperm.slane %v94, 1
  %v240 = vperm.slane %v94, 2
  %v241 = vperm.slane %v94, 3
  %v278 = vmul.f32 %v114, %v206
  %v279 = vmul.f32 %v113, %v207
  %v280 = vmul.f32 %v112, %v208
  %v281 = vmul.f32 %v111, %v209
  %v282 = vmul.f32 %v127, %v210
  %v283 = vmul.f32 %v126, %v211
  %v284 = vmul.f32 %v125, %v212
  %v285 = vmul.f32 %v124, %v213
  %v286 = vmul.f32 %v140, %v214
  %v287 = vmul.f32 %v139, %v215
  %v288 = vmul.f32 %v138, %v216
  %v289 = vmul.f32 %v137, %v217
  %v290 = vmul.f32 %v153, %v218
  %v291 = vmul.f32 %v152, %v219
  %v292 = vmul.f32 %v151, %v220
  %v293 = vmul.f32 %v150, %v221
  %v294 = vmul.f32 %v95, %v222
  %v295 = vmul.f32 %v96, %v223
  %v296 = vmul.f32 %v97, %v224
  %v297 = vmul.f32 %v98, %v225
  %v298 = vmul.f32 %v165, %v226
  %v299 = vmul.f32 %v164, %v227
  %v300 = vmul.f32 %v163, %v228
  %v301 = vmul.f32 %v166, %v229
  %v302 = vmul.f32 %v178, %v230
  %v303 = vmul.f32 %v177, %v231
  %v304 = vmul.f32 %v176, %v232
  %v305 = vmul.f32 %v179, %v233
  %v306 = vmul.f32 %v191, %v234
  %v307 = vmul.f32 %v190, %v235
  %v308 = vmul.f32 %v189, %v236
  %v309 = vmul.f32 %v192, %v237
  %v310 = vmul.f32 %v204, %v238
  %v311 = vmul.f32 %v203, %v239
  %v312 = vmul.f32 %v202, %v240
  %v313 = vmul.f32 %v205, %v241
  %vm314 = vcmask 588800
  %v316 = vsel %vm314, %v99, 0
  %318 = vmatpush.msra.mxu0 0.0
  %319 = vmatpush.msra.mxu0 0.0
  %320 = vmatpush.msra.mxu0 0.0
  %321 = vmatpush.msra.mxu0 0.0
  %322 = vmatpush.msra.mxu0 0.0
  %323 = vmatpush.msra.mxu0 0.0
  %324 = vmatpush.msra.mxu0 0.0
  %325 = vmatpush.msra.mxu0 %v310
  %326 = vmatpush.msra.mxu0 %v306
  %327 = vmatpush.msra.mxu0 %v302
  %328 = vmatpush.msra.mxu0 %v298
  %329 = vmatpush.msra.mxu0 %v294
  %330 = vmatpush.msra.mxu0 %v290
  %331 = vmatpush.msra.mxu0 %v286
  %332 = vmatpush.msra.mxu0 %v282
  %333 = vmatpush.msra.mxu0 %v278
  %334 = vmatmul.f32.gmra.mxu0 %v316
  %v335 = vpop.f32.mrf.mxu0
  %v336 = vadd.f32 0.0, %v335
  %337 = vdwg.mxu0
  %338 = vmatpush.msra.mxu0 0.0
  %339 = vmatpush.msra.mxu0 0.0
  %340 = vmatpush.msra.mxu0 0.0
  %341 = vmatpush.msra.mxu0 0.0
  %342 = vmatpush.msra.mxu0 0.0
  %343 = vmatpush.msra.mxu0 0.0
  %344 = vmatpush.msra.mxu0 0.0
  %345 = vmatpush.msra.mxu0 %v311
  %346 = vmatpush.msra.mxu0 %v307
  %347 = vmatpush.msra.mxu0 %v303
  %348 = vmatpush.msra.mxu0 %v299
  %349 = vmatpush.msra.mxu0 %v295
  %350 = vmatpush.msra.mxu0 %v291
  %351 = vmatpush.msra.mxu0 %v287
  %352 = vmatpush.msra.mxu0 %v283
  %353 = vmatpush.msra.mxu0 %v279
  %354 = vmatmul.f32.gmra.mxu0 %v316
  %v355 = vpop.f32.mrf.mxu0
  %v356 = vadd.f32 0.0, %v355
  %357 = vdwg.mxu0
  %358 = vmatpush.msra.mxu0 0.0
  %359 = vmatpush.msra.mxu0 0.0
  %360 = vmatpush.msra.mxu0 0.0
  %361 = vmatpush.msra.mxu0 0.0
  %362 = vmatpush.msra.mxu0 0.0
  %363 = vmatpush.msra.mxu0 0.0
  %364 = vmatpush.msra.mxu0 0.0
  %365 = vmatpush.msra.mxu0 %v312
  %366 = vmatpush.msra.mxu0 %v308
  %367 = vmatpush.msra.mxu0 %v304
  %368 = vmatpush.msra.mxu0 %v300
  %369 = vmatpush.msra.mxu0 %v296
  %370 = vmatpush.msra.mxu0 %v292
  %371 = vmatpush.msra.mxu0 %v288
  %372 = vmatpush.msra.mxu0 %v284
  %373 = vmatpush.msra.mxu0 %v280
  %374 = vmatmul.f32.gmra.mxu0 %v316
  %v375 = vpop.f32.mrf.mxu0
  %v376 = vadd.f32 0.0, %v375
  %377 = vdwg.mxu0
  %378 = vmatpush.msra.mxu0 0.0
  %379 = vmatpush.msra.mxu0 0.0
  %380 = vmatpush.msra.mxu0 0.0
  %381 = vmatpush.msra.mxu0 0.0
  %382 = vmatpush.msra.mxu0 0.0
  %383 = vmatpush.msra.mxu0 0.0
  %384 = vmatpush.msra.mxu0 0.0
  %385 = vmatpush.msra.mxu0 %v313
  %386 = vmatpush.msra.mxu0 %v309
  %387 = vmatpush.msra.mxu0 %v305
  %388 = vmatpush.msra.mxu0 %v301
  %389 = vmatpush.msra.mxu0 %v297
  %390 = vmatpush.msra.mxu0 %v293
  %391 = vmatpush.msra.mxu0 %v289
  %392 = vmatpush.msra.mxu0 %v285
  %393 = vmatpush.msra.mxu0 %v281
  %394 = vmatmul.f32.gmra.mxu0 %v316
  %v395 = vpop.f32.mrf.mxu0
  %v396 = vadd.f32 0.0, %v395
  %397 = vdwg.mxu0
  %v398 = vadd.f32 %v336, %v356
  %399 = vadd.xlane.f32.xlu0 %v398
  %v400 = vpop.xlane.xlu0 %399
  %v401 = vrcp.pop 256.0
  %v402 = vmul.f32 256.0, %v401
  %v403 = vsub.f32 1.0, %v402
  %v404 = vmul.f32 %v401, %v403
  %v405 = vadd.f32 %v401, %v404
  %vm406 = vweird.f32 %v401
  %v407 = vsel %vm406, %v401, %v405
  %v408 = vmul.f32 %v400, %v407
  %v409 = vmul.f32 %v336, %v336
  %v410 = vmul.f32 %v356, %v356
  %v411 = vadd.f32 %v409, %v410
  %412 = vadd.xlane.f32.xlu0 %v411
  %v413 = vpop.xlane.xlu0 %412
  %v414 = vmul.f32 %v413, %v407
  %v415 = vmul.f32 %v408, %v408
  %v416 = vsub.f32 %v414, %v415
  %v417 = vmax.f32 %v416, 0.0
  %v418 = vsub.f32 %v336, %v408
  %v419 = vsub.f32 %v356, %v408
  %v420 = vadd.f32 %v417, 1e-05
  %v421 = vrsqrt.pop %v420
  %v422 = vmul.f32 %v421, %v420
  %v423 = vmul.f32 %v422, %v421
  %v424 = vmul.f32 0.5, %v423
  %v425 = vsub.f32 1.5, %v424
  %v426 = vmul.f32 %v421, %v425
  %vm427 = vweird.f32 %v420
  %vm428 = vweird.f32 %v421
  %vm429 = vmor %vm427, %vm428
  %v430 = vsel %vm429, %v421, %v426
  %v431 = vmul.f32 %v418, %v430
  %v432 = vmul.f32 %v419, %v430
  %v433 = vmax.f32 %v431, 0.0
  %v434 = vmax.f32 %v432, 0.0
  %v435 = vadd.f32 %v376, %v396
  %436 = vadd.xlane.f32.xlu0 %v435
  %v437 = vpop.xlane.xlu0 %436
  %v438 = vmul.f32 %v437, %v407
  %v439 = vmul.f32 %v376, %v376
  %v440 = vmul.f32 %v396, %v396
  %v441 = vadd.f32 %v439, %v440
  %442 = vadd.xlane.f32.xlu0 %v441
  %v443 = vpop.xlane.xlu0 %442
  %v444 = vmul.f32 %v443, %v407
  %v445 = vmul.f32 %v438, %v438
  %v446 = vsub.f32 %v444, %v445
  %v447 = vmax.f32 %v446, 0.0
  %v448 = vsub.f32 %v376, %v438
  %v449 = vsub.f32 %v396, %v438
  %v450 = vadd.f32 %v447, 1e-05
  %v451 = vrsqrt.pop %v450
  %v452 = vmul.f32 %v451, %v450
  %v453 = vmul.f32 %v452, %v451
  %v454 = vmul.f32 0.5, %v453
  %v455 = vsub.f32 1.5, %v454
  %v456 = vmul.f32 %v451, %v455
  %vm457 = vweird.f32 %v450
  %vm458 = vweird.f32 %v451
  %vm459 = vmor %vm457, %vm458
  %v460 = vsel %vm459, %v451, %v456
  %v461 = vmul.f32 %v448, %v460
  %v462 = vmul.f32 %v449, %v460
  %v463 = vmax.f32 %v461, 0.0
  %v464 = vmax.f32 %v462, 0.0
  %v465 = vld [vmem:[%s2] sm:$0xff]
  %466 = vrot.lane.b32.xlu0 %v433, 17
  %v467 = vpop.permute.xlu0 %466
  %468 = vrot.lane.b32.xlu0 %v434, 17
  %v469 = vpop.permute.xlu0 %468
  %470 = vrot.lane.b32.xlu0 %v463, 17
  %v471 = vpop.permute.xlu0 %470
  %472 = vrot.lane.b32.xlu0 %v464, 17
  %v473 = vpop.permute.xlu0 %472
  %v474 = vsel %vm110, %v471, %v473
  %v475 = vsel %vm110, %v469, %v471
  %v476 = vsel %vm110, %v467, %v469
  %v477 = vsel %vm110, %v473, %v467
  %478 = vrot.lane.b32.xlu0 %v433, 16
  %v479 = vpop.permute.xlu0 %478
  %480 = vrot.lane.b32.xlu0 %v434, 16
  %v481 = vpop.permute.xlu0 %480
  %482 = vrot.lane.b32.xlu0 %v463, 16
  %v483 = vpop.permute.xlu0 %482
  %484 = vrot.lane.b32.xlu0 %v464, 16
  %v485 = vpop.permute.xlu0 %484
  %v486 = vsel %vm123, %v483, %v485
  %v487 = vsel %vm123, %v481, %v483
  %v488 = vsel %vm123, %v479, %v481
  %v489 = vsel %vm123, %v485, %v479
  %490 = vrot.lane.b32.xlu0 %v433, 15
  %v491 = vpop.permute.xlu0 %490
  %492 = vrot.lane.b32.xlu0 %v434, 15
  %v493 = vpop.permute.xlu0 %492
  %494 = vrot.lane.b32.xlu0 %v463, 15
  %v495 = vpop.permute.xlu0 %494
  %496 = vrot.lane.b32.xlu0 %v464, 15
  %v497 = vpop.permute.xlu0 %496
  %v498 = vsel %vm136, %v495, %v497
  %v499 = vsel %vm136, %v493, %v495
  %v500 = vsel %vm136, %v491, %v493
  %v501 = vsel %vm136, %v497, %v491
  %502 = vrot.lane.b32.xlu0 %v433, 1
  %v503 = vpop.permute.xlu0 %502
  %504 = vrot.lane.b32.xlu0 %v434, 1
  %v505 = vpop.permute.xlu0 %504
  %506 = vrot.lane.b32.xlu0 %v463, 1
  %v507 = vpop.permute.xlu0 %506
  %508 = vrot.lane.b32.xlu0 %v464, 1
  %v509 = vpop.permute.xlu0 %508
  %v510 = vsel %vm149, %v507, %v509
  %v511 = vsel %vm149, %v505, %v507
  %v512 = vsel %vm149, %v503, %v505
  %v513 = vsel %vm149, %v509, %v503
  %514 = vrot.lane.b32.xlu0 %v433, 127
  %v515 = vpop.permute.xlu0 %514
  %516 = vrot.lane.b32.xlu0 %v434, 127
  %v517 = vpop.permute.xlu0 %516
  %518 = vrot.lane.b32.xlu0 %v463, 127
  %v519 = vpop.permute.xlu0 %518
  %520 = vrot.lane.b32.xlu0 %v464, 127
  %v521 = vpop.permute.xlu0 %520
  %v522 = vsel %vm162, %v519, %v521
  %v523 = vsel %vm162, %v517, %v519
  %v524 = vsel %vm162, %v515, %v517
  %v525 = vsel %vm162, %v521, %v515
  %526 = vrot.lane.b32.xlu0 %v433, 113
  %v527 = vpop.permute.xlu0 %526
  %528 = vrot.lane.b32.xlu0 %v434, 113
  %v529 = vpop.permute.xlu0 %528
  %530 = vrot.lane.b32.xlu0 %v463, 113
  %v531 = vpop.permute.xlu0 %530
  %532 = vrot.lane.b32.xlu0 %v464, 113
  %v533 = vpop.permute.xlu0 %532
  %v534 = vsel %vm175, %v531, %v533
  %v535 = vsel %vm175, %v529, %v531
  %v536 = vsel %vm175, %v527, %v529
  %v537 = vsel %vm175, %v533, %v527
  %538 = vrot.lane.b32.xlu0 %v433, 112
  %v539 = vpop.permute.xlu0 %538
  %540 = vrot.lane.b32.xlu0 %v434, 112
  %v541 = vpop.permute.xlu0 %540
  %542 = vrot.lane.b32.xlu0 %v463, 112
  %v543 = vpop.permute.xlu0 %542
  %544 = vrot.lane.b32.xlu0 %v464, 112
  %v545 = vpop.permute.xlu0 %544
  %v546 = vsel %vm188, %v543, %v545
  %v547 = vsel %vm188, %v541, %v543
  %v548 = vsel %vm188, %v539, %v541
  %v549 = vsel %vm188, %v545, %v539
  %550 = vrot.lane.b32.xlu0 %v433, 111
  %v551 = vpop.permute.xlu0 %550
  %552 = vrot.lane.b32.xlu0 %v434, 111
  %v553 = vpop.permute.xlu0 %552
  %554 = vrot.lane.b32.xlu0 %v463, 111
  %v555 = vpop.permute.xlu0 %554
  %556 = vrot.lane.b32.xlu0 %v464, 111
  %v557 = vpop.permute.xlu0 %556
  %v558 = vsel %vm201, %v555, %v557
  %v559 = vsel %vm201, %v553, %v555
  %v560 = vsel %vm201, %v551, %v553
  %v561 = vsel %vm201, %v557, %v551
  %v562 = vmul.f32 %v477, %v206
  %v563 = vmul.f32 %v476, %v207
  %v564 = vmul.f32 %v475, %v208
  %v565 = vmul.f32 %v474, %v209
  %v566 = vmul.f32 %v489, %v210
  %v567 = vmul.f32 %v488, %v211
  %v568 = vmul.f32 %v487, %v212
  %v569 = vmul.f32 %v486, %v213
  %v570 = vmul.f32 %v501, %v214
  %v571 = vmul.f32 %v500, %v215
  %v572 = vmul.f32 %v499, %v216
  %v573 = vmul.f32 %v498, %v217
  %v574 = vmul.f32 %v513, %v218
  %v575 = vmul.f32 %v512, %v219
  %v576 = vmul.f32 %v511, %v220
  %v577 = vmul.f32 %v510, %v221
  %v578 = vmul.f32 %v433, %v222
  %v579 = vmul.f32 %v434, %v223
  %v580 = vmul.f32 %v463, %v224
  %v581 = vmul.f32 %v464, %v225
  %v582 = vmul.f32 %v524, %v226
  %v583 = vmul.f32 %v523, %v227
  %v584 = vmul.f32 %v522, %v228
  %v585 = vmul.f32 %v525, %v229
  %v586 = vmul.f32 %v536, %v230
  %v587 = vmul.f32 %v535, %v231
  %v588 = vmul.f32 %v534, %v232
  %v589 = vmul.f32 %v537, %v233
  %v590 = vmul.f32 %v548, %v234
  %v591 = vmul.f32 %v547, %v235
  %v592 = vmul.f32 %v546, %v236
  %v593 = vmul.f32 %v549, %v237
  %v594 = vmul.f32 %v560, %v238
  %v595 = vmul.f32 %v559, %v239
  %v596 = vmul.f32 %v558, %v240
  %v597 = vmul.f32 %v561, %v241
  %v599 = vsel %vm314, %v465, 0
  %601 = vmatpush.msra.mxu0 0.0
  %602 = vmatpush.msra.mxu0 0.0
  %603 = vmatpush.msra.mxu0 0.0
  %604 = vmatpush.msra.mxu0 0.0
  %605 = vmatpush.msra.mxu0 0.0
  %606 = vmatpush.msra.mxu0 0.0
  %607 = vmatpush.msra.mxu0 0.0
  %608 = vmatpush.msra.mxu0 %v594
  %609 = vmatpush.msra.mxu0 %v590
  %610 = vmatpush.msra.mxu0 %v586
  %611 = vmatpush.msra.mxu0 %v582
  %612 = vmatpush.msra.mxu0 %v578
  %613 = vmatpush.msra.mxu0 %v574
  %614 = vmatpush.msra.mxu0 %v570
  %615 = vmatpush.msra.mxu0 %v566
  %616 = vmatpush.msra.mxu0 %v562
  %617 = vmatmul.f32.gmra.mxu0 %v599
  %v618 = vpop.f32.mrf.mxu0
  %v619 = vadd.f32 0.0, %v618
  %620 = vdwg.mxu0
  %621 = vmatpush.msra.mxu0 0.0
  %622 = vmatpush.msra.mxu0 0.0
  %623 = vmatpush.msra.mxu0 0.0
  %624 = vmatpush.msra.mxu0 0.0
  %625 = vmatpush.msra.mxu0 0.0
  %626 = vmatpush.msra.mxu0 0.0
  %627 = vmatpush.msra.mxu0 0.0
  %628 = vmatpush.msra.mxu0 %v595
  %629 = vmatpush.msra.mxu0 %v591
  %630 = vmatpush.msra.mxu0 %v587
  %631 = vmatpush.msra.mxu0 %v583
  %632 = vmatpush.msra.mxu0 %v579
  %633 = vmatpush.msra.mxu0 %v575
  %634 = vmatpush.msra.mxu0 %v571
  %635 = vmatpush.msra.mxu0 %v567
  %636 = vmatpush.msra.mxu0 %v563
  %637 = vmatmul.f32.gmra.mxu0 %v599
  %v638 = vpop.f32.mrf.mxu0
  %v639 = vadd.f32 0.0, %v638
  %640 = vdwg.mxu0
  %641 = vmatpush.msra.mxu0 0.0
  %642 = vmatpush.msra.mxu0 0.0
  %643 = vmatpush.msra.mxu0 0.0
  %644 = vmatpush.msra.mxu0 0.0
  %645 = vmatpush.msra.mxu0 0.0
  %646 = vmatpush.msra.mxu0 0.0
  %647 = vmatpush.msra.mxu0 0.0
  %648 = vmatpush.msra.mxu0 %v596
  %649 = vmatpush.msra.mxu0 %v592
  %650 = vmatpush.msra.mxu0 %v588
  %651 = vmatpush.msra.mxu0 %v584
  %652 = vmatpush.msra.mxu0 %v580
  %653 = vmatpush.msra.mxu0 %v576
  %654 = vmatpush.msra.mxu0 %v572
  %655 = vmatpush.msra.mxu0 %v568
  %656 = vmatpush.msra.mxu0 %v564
  %657 = vmatmul.f32.gmra.mxu0 %v599
  %v658 = vpop.f32.mrf.mxu0
  %v659 = vadd.f32 0.0, %v658
  %660 = vdwg.mxu0
  %661 = vmatpush.msra.mxu0 0.0
  %662 = vmatpush.msra.mxu0 0.0
  %663 = vmatpush.msra.mxu0 0.0
  %664 = vmatpush.msra.mxu0 0.0
  %665 = vmatpush.msra.mxu0 0.0
  %666 = vmatpush.msra.mxu0 0.0
  %667 = vmatpush.msra.mxu0 0.0
  %668 = vmatpush.msra.mxu0 %v597
  %669 = vmatpush.msra.mxu0 %v593
  %670 = vmatpush.msra.mxu0 %v589
  %671 = vmatpush.msra.mxu0 %v585
  %672 = vmatpush.msra.mxu0 %v581
  %673 = vmatpush.msra.mxu0 %v577
  %674 = vmatpush.msra.mxu0 %v573
  %675 = vmatpush.msra.mxu0 %v569
  %676 = vmatpush.msra.mxu0 %v565
  %677 = vmatmul.f32.gmra.mxu0 %v599
  %v678 = vpop.f32.mrf.mxu0
  %v679 = vadd.f32 0.0, %v678
  %680 = vdwg.mxu0
  %v681 = vadd.f32 %v619, %v639
  %682 = vadd.xlane.f32.xlu0 %v681
  %v683 = vpop.xlane.xlu0 %682
  %v684 = vmul.f32 %v683, %v407
  %v685 = vmul.f32 %v619, %v619
  %v686 = vmul.f32 %v639, %v639
  %v687 = vadd.f32 %v685, %v686
  %688 = vadd.xlane.f32.xlu0 %v687
  %v689 = vpop.xlane.xlu0 %688
  %v690 = vmul.f32 %v689, %v407
  %v691 = vmul.f32 %v684, %v684
  %v692 = vsub.f32 %v690, %v691
  %v693 = vmax.f32 %v692, 0.0
  %v694 = vsub.f32 %v619, %v684
  %v695 = vsub.f32 %v639, %v684
  %v696 = vadd.f32 %v693, 1e-05
  %v697 = vrsqrt.pop %v696
  %v698 = vmul.f32 %v697, %v696
  %v699 = vmul.f32 %v698, %v697
  %v700 = vmul.f32 0.5, %v699
  %v701 = vsub.f32 1.5, %v700
  %v702 = vmul.f32 %v697, %v701
  %vm703 = vweird.f32 %v696
  %vm704 = vweird.f32 %v697
  %vm705 = vmor %vm703, %vm704
  %v706 = vsel %vm705, %v697, %v702
  %v707 = vmul.f32 %v694, %v706
  %v708 = vmul.f32 %v695, %v706
  %v709 = vmax.f32 %v707, 0.0
  %v710 = vmax.f32 %v708, 0.0
  %v711 = vadd.f32 %v659, %v679
  %712 = vadd.xlane.f32.xlu0 %v711
  %v713 = vpop.xlane.xlu0 %712
  %v714 = vmul.f32 %v713, %v407
  %v715 = vmul.f32 %v659, %v659
  %v716 = vmul.f32 %v679, %v679
  %v717 = vadd.f32 %v715, %v716
  %718 = vadd.xlane.f32.xlu0 %v717
  %v719 = vpop.xlane.xlu0 %718
  %v720 = vmul.f32 %v719, %v407
  %v721 = vmul.f32 %v714, %v714
  %v722 = vsub.f32 %v720, %v721
  %v723 = vmax.f32 %v722, 0.0
  %v724 = vsub.f32 %v659, %v714
  %v725 = vsub.f32 %v679, %v714
  %v726 = vadd.f32 %v723, 1e-05
  %v727 = vrsqrt.pop %v726
  %v728 = vmul.f32 %v727, %v726
  %v729 = vmul.f32 %v728, %v727
  %v730 = vmul.f32 0.5, %v729
  %v731 = vsub.f32 1.5, %v730
  %v732 = vmul.f32 %v727, %v731
  %vm733 = vweird.f32 %v726
  %vm734 = vweird.f32 %v727
  %vm735 = vmor %vm733, %vm734
  %v736 = vsel %vm735, %v727, %v732
  %v737 = vmul.f32 %v724, %v736
  %v738 = vmul.f32 %v725, %v736
  %v739 = vmax.f32 %v737, 0.0
  %v740 = vmax.f32 %v738, 0.0
  %v741 = vld [vmem:[%s3] sm:$0xff]
  %742 = vrot.lane.b32.xlu0 %v709, 17
  %v743 = vpop.permute.xlu0 %742
  %744 = vrot.lane.b32.xlu0 %v710, 17
  %v745 = vpop.permute.xlu0 %744
  %746 = vrot.lane.b32.xlu0 %v739, 17
  %v747 = vpop.permute.xlu0 %746
  %748 = vrot.lane.b32.xlu0 %v740, 17
  %v749 = vpop.permute.xlu0 %748
  %v750 = vsel %vm110, %v747, %v749
  %v751 = vsel %vm110, %v745, %v747
  %v752 = vsel %vm110, %v743, %v745
  %v753 = vsel %vm110, %v749, %v743
  %754 = vrot.lane.b32.xlu0 %v709, 16
  %v755 = vpop.permute.xlu0 %754
  %756 = vrot.lane.b32.xlu0 %v710, 16
  %v757 = vpop.permute.xlu0 %756
  %758 = vrot.lane.b32.xlu0 %v739, 16
  %v759 = vpop.permute.xlu0 %758
  %760 = vrot.lane.b32.xlu0 %v740, 16
  %v761 = vpop.permute.xlu0 %760
  %v762 = vsel %vm123, %v759, %v761
  %v763 = vsel %vm123, %v757, %v759
  %v764 = vsel %vm123, %v755, %v757
  %v765 = vsel %vm123, %v761, %v755
  %766 = vrot.lane.b32.xlu0 %v709, 15
  %v767 = vpop.permute.xlu0 %766
  %768 = vrot.lane.b32.xlu0 %v710, 15
  %v769 = vpop.permute.xlu0 %768
  %770 = vrot.lane.b32.xlu0 %v739, 15
  %v771 = vpop.permute.xlu0 %770
  %772 = vrot.lane.b32.xlu0 %v740, 15
  %v773 = vpop.permute.xlu0 %772
  %v774 = vsel %vm136, %v771, %v773
  %v775 = vsel %vm136, %v769, %v771
  %v776 = vsel %vm136, %v767, %v769
  %v777 = vsel %vm136, %v773, %v767
  %778 = vrot.lane.b32.xlu0 %v709, 1
  %v779 = vpop.permute.xlu0 %778
  %780 = vrot.lane.b32.xlu0 %v710, 1
  %v781 = vpop.permute.xlu0 %780
  %782 = vrot.lane.b32.xlu0 %v739, 1
  %v783 = vpop.permute.xlu0 %782
  %784 = vrot.lane.b32.xlu0 %v740, 1
  %v785 = vpop.permute.xlu0 %784
  %v786 = vsel %vm149, %v783, %v785
  %v787 = vsel %vm149, %v781, %v783
  %v788 = vsel %vm149, %v779, %v781
  %v789 = vsel %vm149, %v785, %v779
  %790 = vrot.lane.b32.xlu0 %v709, 127
  %v791 = vpop.permute.xlu0 %790
  %792 = vrot.lane.b32.xlu0 %v710, 127
  %v793 = vpop.permute.xlu0 %792
  %794 = vrot.lane.b32.xlu0 %v739, 127
  %v795 = vpop.permute.xlu0 %794
  %796 = vrot.lane.b32.xlu0 %v740, 127
  %v797 = vpop.permute.xlu0 %796
  %v798 = vsel %vm162, %v795, %v797
  %v799 = vsel %vm162, %v793, %v795
  %v800 = vsel %vm162, %v791, %v793
  %v801 = vsel %vm162, %v797, %v791
  %802 = vrot.lane.b32.xlu0 %v709, 113
  %v803 = vpop.permute.xlu0 %802
  %804 = vrot.lane.b32.xlu0 %v710, 113
  %v805 = vpop.permute.xlu0 %804
  %806 = vrot.lane.b32.xlu0 %v739, 113
  %v807 = vpop.permute.xlu0 %806
  %808 = vrot.lane.b32.xlu0 %v740, 113
  %v809 = vpop.permute.xlu0 %808
  %v810 = vsel %vm175, %v807, %v809
  %v811 = vsel %vm175, %v805, %v807
  %v812 = vsel %vm175, %v803, %v805
  %v813 = vsel %vm175, %v809, %v803
  %814 = vrot.lane.b32.xlu0 %v709, 112
  %v815 = vpop.permute.xlu0 %814
  %816 = vrot.lane.b32.xlu0 %v710, 112
  %v817 = vpop.permute.xlu0 %816
  %818 = vrot.lane.b32.xlu0 %v739, 112
  %v819 = vpop.permute.xlu0 %818
  %820 = vrot.lane.b32.xlu0 %v740, 112
  %v821 = vpop.permute.xlu0 %820
  %v822 = vsel %vm188, %v819, %v821
  %v823 = vsel %vm188, %v817, %v819
  %v824 = vsel %vm188, %v815, %v817
  %v825 = vsel %vm188, %v821, %v815
  %826 = vrot.lane.b32.xlu0 %v709, 111
  %v827 = vpop.permute.xlu0 %826
  %828 = vrot.lane.b32.xlu0 %v710, 111
  %v829 = vpop.permute.xlu0 %828
  %830 = vrot.lane.b32.xlu0 %v739, 111
  %v831 = vpop.permute.xlu0 %830
  %832 = vrot.lane.b32.xlu0 %v740, 111
  %v833 = vpop.permute.xlu0 %832
  %v834 = vsel %vm201, %v831, %v833
  %v835 = vsel %vm201, %v829, %v831
  %v836 = vsel %vm201, %v827, %v829
  %v837 = vsel %vm201, %v833, %v827
  %v838 = vmul.f32 %v753, %v206
  %v839 = vmul.f32 %v752, %v207
  %v840 = vmul.f32 %v751, %v208
  %v841 = vmul.f32 %v750, %v209
  %v842 = vmul.f32 %v765, %v210
  %v843 = vmul.f32 %v764, %v211
  %v844 = vmul.f32 %v763, %v212
  %v845 = vmul.f32 %v762, %v213
  %v846 = vmul.f32 %v777, %v214
  %v847 = vmul.f32 %v776, %v215
  %v848 = vmul.f32 %v775, %v216
  %v849 = vmul.f32 %v774, %v217
  %v850 = vmul.f32 %v789, %v218
  %v851 = vmul.f32 %v788, %v219
  %v852 = vmul.f32 %v787, %v220
  %v853 = vmul.f32 %v786, %v221
  %v854 = vmul.f32 %v709, %v222
  %v855 = vmul.f32 %v710, %v223
  %v856 = vmul.f32 %v739, %v224
  %v857 = vmul.f32 %v740, %v225
  %v858 = vmul.f32 %v800, %v226
  %v859 = vmul.f32 %v799, %v227
  %v860 = vmul.f32 %v798, %v228
  %v861 = vmul.f32 %v801, %v229
  %v862 = vmul.f32 %v812, %v230
  %v863 = vmul.f32 %v811, %v231
  %v864 = vmul.f32 %v810, %v232
  %v865 = vmul.f32 %v813, %v233
  %v866 = vmul.f32 %v824, %v234
  %v867 = vmul.f32 %v823, %v235
  %v868 = vmul.f32 %v822, %v236
  %v869 = vmul.f32 %v825, %v237
  %v870 = vmul.f32 %v836, %v238
  %v871 = vmul.f32 %v835, %v239
  %v872 = vmul.f32 %v834, %v240
  %v873 = vmul.f32 %v837, %v241
  %v875 = vsel %vm314, %v741, 0
  %877 = vmatpush.msra.mxu0 0.0
  %878 = vmatpush.msra.mxu0 0.0
  %879 = vmatpush.msra.mxu0 0.0
  %880 = vmatpush.msra.mxu0 0.0
  %881 = vmatpush.msra.mxu0 0.0
  %882 = vmatpush.msra.mxu0 0.0
  %883 = vmatpush.msra.mxu0 0.0
  %884 = vmatpush.msra.mxu0 %v870
  %885 = vmatpush.msra.mxu0 %v866
  %886 = vmatpush.msra.mxu0 %v862
  %887 = vmatpush.msra.mxu0 %v858
  %888 = vmatpush.msra.mxu0 %v854
  %889 = vmatpush.msra.mxu0 %v850
  %890 = vmatpush.msra.mxu0 %v846
  %891 = vmatpush.msra.mxu0 %v842
  %892 = vmatpush.msra.mxu0 %v838
  %893 = vmatmul.f32.gmra.mxu0 %v875
  %v894 = vpop.f32.mrf.mxu0
  %v895 = vadd.f32 0.0, %v894
  %896 = vdwg.mxu0
  %897 = vmatpush.msra.mxu0 0.0
  %898 = vmatpush.msra.mxu0 0.0
  %899 = vmatpush.msra.mxu0 0.0
  %900 = vmatpush.msra.mxu0 0.0
  %901 = vmatpush.msra.mxu0 0.0
  %902 = vmatpush.msra.mxu0 0.0
  %903 = vmatpush.msra.mxu0 0.0
  %904 = vmatpush.msra.mxu0 %v871
  %905 = vmatpush.msra.mxu0 %v867
  %906 = vmatpush.msra.mxu0 %v863
  %907 = vmatpush.msra.mxu0 %v859
  %908 = vmatpush.msra.mxu0 %v855
  %909 = vmatpush.msra.mxu0 %v851
  %910 = vmatpush.msra.mxu0 %v847
  %911 = vmatpush.msra.mxu0 %v843
  %912 = vmatpush.msra.mxu0 %v839
  %913 = vmatmul.f32.gmra.mxu0 %v875
  %v914 = vpop.f32.mrf.mxu0
  %v915 = vadd.f32 0.0, %v914
  %916 = vdwg.mxu0
  %917 = vmatpush.msra.mxu0 0.0
  %918 = vmatpush.msra.mxu0 0.0
  %919 = vmatpush.msra.mxu0 0.0
  %920 = vmatpush.msra.mxu0 0.0
  %921 = vmatpush.msra.mxu0 0.0
  %922 = vmatpush.msra.mxu0 0.0
  %923 = vmatpush.msra.mxu0 0.0
  %924 = vmatpush.msra.mxu0 %v872
  %925 = vmatpush.msra.mxu0 %v868
  %926 = vmatpush.msra.mxu0 %v864
  %927 = vmatpush.msra.mxu0 %v860
  %928 = vmatpush.msra.mxu0 %v856
  %929 = vmatpush.msra.mxu0 %v852
  %930 = vmatpush.msra.mxu0 %v848
  %931 = vmatpush.msra.mxu0 %v844
  %932 = vmatpush.msra.mxu0 %v840
  %933 = vmatmul.f32.gmra.mxu0 %v875
  %v934 = vpop.f32.mrf.mxu0
  %v935 = vadd.f32 0.0, %v934
  %936 = vdwg.mxu0
  %937 = vmatpush.msra.mxu0 0.0
  %938 = vmatpush.msra.mxu0 0.0
  %939 = vmatpush.msra.mxu0 0.0
  %940 = vmatpush.msra.mxu0 0.0
  %941 = vmatpush.msra.mxu0 0.0
  %942 = vmatpush.msra.mxu0 0.0
  %943 = vmatpush.msra.mxu0 0.0
  %944 = vmatpush.msra.mxu0 %v873
  %945 = vmatpush.msra.mxu0 %v869
  %946 = vmatpush.msra.mxu0 %v865
  %947 = vmatpush.msra.mxu0 %v861
  %948 = vmatpush.msra.mxu0 %v857
  %949 = vmatpush.msra.mxu0 %v853
  %950 = vmatpush.msra.mxu0 %v849
  %951 = vmatpush.msra.mxu0 %v845
  %952 = vmatpush.msra.mxu0 %v841
  %953 = vmatmul.f32.gmra.mxu0 %v875
  %v954 = vpop.f32.mrf.mxu0
  %v955 = vadd.f32 0.0, %v954
  %956 = vdwg.mxu0
  %v957 = vadd.f32 %v895, %v915
  %958 = vadd.xlane.f32.xlu0 %v957
  %v959 = vpop.xlane.xlu0 %958
  %v960 = vmul.f32 %v959, %v407
  %v961 = vmul.f32 %v895, %v895
  %v962 = vmul.f32 %v915, %v915
  %v963 = vadd.f32 %v961, %v962
  %964 = vadd.xlane.f32.xlu0 %v963
  %v965 = vpop.xlane.xlu0 %964
  %v966 = vmul.f32 %v965, %v407
  %v967 = vmul.f32 %v960, %v960
  %v968 = vsub.f32 %v966, %v967
  %v969 = vmax.f32 %v968, 0.0
  %v970 = vsub.f32 %v895, %v960
  %v971 = vsub.f32 %v915, %v960
  %v972 = vadd.f32 %v969, 1e-05
  %v973 = vrsqrt.pop %v972
  %v974 = vmul.f32 %v973, %v972
  %v975 = vmul.f32 %v974, %v973
  %v976 = vmul.f32 0.5, %v975
  %v977 = vsub.f32 1.5, %v976
  %v978 = vmul.f32 %v973, %v977
  %vm979 = vweird.f32 %v972
  %vm980 = vweird.f32 %v973
  %vm981 = vmor %vm979, %vm980
  %v982 = vsel %vm981, %v973, %v978
  %v983 = vmul.f32 %v970, %v982
  %v984 = vmul.f32 %v971, %v982
  %v985 = vmax.f32 %v983, 0.0
  %v986 = vmax.f32 %v984, 0.0
  %v987 = vadd.f32 %v935, %v955
  %988 = vadd.xlane.f32.xlu0 %v987
  %v989 = vpop.xlane.xlu0 %988
  %v990 = vmul.f32 %v989, %v407
  %v991 = vmul.f32 %v935, %v935
  %v992 = vmul.f32 %v955, %v955
  %v993 = vadd.f32 %v991, %v992
  %994 = vadd.xlane.f32.xlu0 %v993
  %v995 = vpop.xlane.xlu0 %994
  %v996 = vmul.f32 %v995, %v407
  %v997 = vmul.f32 %v990, %v990
  %v998 = vsub.f32 %v996, %v997
  %v999 = vmax.f32 %v998, 0.0
  %v1000 = vsub.f32 %v935, %v990
  %v1001 = vsub.f32 %v955, %v990
  %v1002 = vadd.f32 %v999, 1e-05
  %v1003 = vrsqrt.pop %v1002
  %v1004 = vmul.f32 %v1003, %v1002
  %v1005 = vmul.f32 %v1004, %v1003
  %v1006 = vmul.f32 0.5, %v1005
  %v1007 = vsub.f32 1.5, %v1006
  %v1008 = vmul.f32 %v1003, %v1007
  %vm1009 = vweird.f32 %v1002
  %vm1010 = vweird.f32 %v1003
  %vm1011 = vmor %vm1009, %vm1010
  %v1012 = vsel %vm1011, %v1003, %v1008
  %v1013 = vmul.f32 %v1000, %v1012
  %v1014 = vmul.f32 %v1001, %v1012
  %v1015 = vmax.f32 %v1013, 0.0
  %v1016 = vmax.f32 %v1014, 0.0
  %v1017 = vld [vmem:[%s5] sm:$0xff]
  %v1018 = vld [vmem:[%s5 + $0x8] sm:$0xff]
  %v1019 = vld [vmem:[%s5 + $0x10] sm:$0xff]
  %v1020 = vld [vmem:[%s5 + $0x18] sm:$0xff]
  %v1021 = vld [vmem:[%s5 + $0x20] sm:$0xff]
  %v1022 = vld [vmem:[%s5 + $0x28] sm:$0xff]
  %v1023 = vld [vmem:[%s5 + $0x30] sm:$0xff]
  %v1024 = vld [vmem:[%s5 + $0x38] sm:$0xff]
  %v1025 = vld [vmem:[%s5 + $0x40] sm:$0xff]
  %v1026 = vld [vmem:[%s5 + $0x48] sm:$0xff]
  %v1027 = vld [vmem:[%s5 + $0x50] sm:$0xff]
  %v1028 = vld [vmem:[%s5 + $0x58] sm:$0xff]
  %v1029 = vld [vmem:[%s5 + $0x60] sm:$0xff]
  %v1030 = vld [vmem:[%s5 + $0x68] sm:$0xff]
  %v1031 = vld [vmem:[%s5 + $0x70] sm:$0xff]
  %v1032 = vld [vmem:[%s5 + $0x78] sm:$0xff]
  %v1033 = vld [vmem:[%s5 + $0x80] sm:$0xff]
  %v1034 = vld [vmem:[%s5 + $0x88] sm:$0xff]
  %v1035 = vld [vmem:[%s5 + $0x90] sm:$0xff]
  %v1036 = vld [vmem:[%s5 + $0x98] sm:$0xff]
  %v1037 = vld [vmem:[%s5 + $0xa0] sm:$0xff]
  %v1038 = vld [vmem:[%s5 + $0xa8] sm:$0xff]
  %v1039 = vld [vmem:[%s5 + $0xb0] sm:$0xff]
  %v1040 = vld [vmem:[%s5 + $0xb8] sm:$0xff]
  %v1041 = vld [vmem:[%s5 + $0xc0] sm:$0xff]
  %v1042 = vld [vmem:[%s5 + $0xc8] sm:$0xff]
  %v1043 = vld [vmem:[%s5 + $0xd0] sm:$0xff]
  %v1044 = vld [vmem:[%s5 + $0xd8] sm:$0xff]
  %v1045 = vld [vmem:[%s5 + $0xe0] sm:$0xff]
  %v1046 = vld [vmem:[%s5 + $0xe8] sm:$0xff]
  %v1047 = vld [vmem:[%s5 + $0xf0] sm:$0xff]
  %v1048 = vld [vmem:[%s5 + $0xf8] sm:$0xff]
  %v1049 = vld [vmem:[%s5 + $0x100] sm:$0xff]
  %v1050 = vld [vmem:[%s5 + $0x108] sm:$0xff]
  %v1051 = vld [vmem:[%s5 + $0x110] sm:$0xff]
  %v1052 = vld [vmem:[%s5 + $0x118] sm:$0xff]
  %v1053 = vld [vmem:[%s5 + $0x120] sm:$0xff]
  %v1054 = vld [vmem:[%s5 + $0x128] sm:$0xff]
  %v1055 = vld [vmem:[%s5 + $0x130] sm:$0xff]
  %v1056 = vld [vmem:[%s5 + $0x138] sm:$0xff]
  %v1057 = vld [vmem:[%s5 + $0x140] sm:$0xff]
  %v1058 = vld [vmem:[%s5 + $0x148] sm:$0xff]
  %v1059 = vld [vmem:[%s5 + $0x150] sm:$0xff]
  %v1060 = vld [vmem:[%s5 + $0x158] sm:$0xff]
  %v1061 = vld [vmem:[%s5 + $0x160] sm:$0xff]
  %v1062 = vld [vmem:[%s5 + $0x168] sm:$0xff]
  %v1063 = vld [vmem:[%s5 + $0x170] sm:$0xff]
  %v1064 = vld [vmem:[%s5 + $0x178] sm:$0xff]
  %v1065 = vld [vmem:[%s5 + $0x180] sm:$0xff]
  %v1066 = vld [vmem:[%s5 + $0x188] sm:$0xff]
  %v1067 = vld [vmem:[%s5 + $0x190] sm:$0xff]
  %v1068 = vld [vmem:[%s5 + $0x198] sm:$0xff]
  %v1069 = vld [vmem:[%s5 + $0x1a0] sm:$0xff]
  %v1070 = vld [vmem:[%s5 + $0x1a8] sm:$0xff]
  %v1071 = vld [vmem:[%s5 + $0x1b0] sm:$0xff]
  %v1072 = vld [vmem:[%s5 + $0x1b8] sm:$0xff]
  %v1073 = vld [vmem:[%s5 + $0x1c0] sm:$0xff]
  %v1074 = vld [vmem:[%s5 + $0x1c8] sm:$0xff]
  %v1075 = vld [vmem:[%s5 + $0x1d0] sm:$0xff]
  %v1076 = vld [vmem:[%s5 + $0x1d8] sm:$0xff]
  %v1077 = vld [vmem:[%s5 + $0x1e0] sm:$0xff]
  %v1078 = vld [vmem:[%s5 + $0x1e8] sm:$0xff]
  %v1079 = vld [vmem:[%s5 + $0x1f0] sm:$0xff]
  %v1080 = vld [vmem:[%s5 + $0x1f8] sm:$0xff]
  %1081 = vrot.lane.b32.xlu0 %v985, 127
  %v1082 = vpop.permute.xlu0 %1081
  %1083 = vrot.lane.b32.xlu0 %v986, 127
  %v1084 = vpop.permute.xlu0 %1083
  %1085 = vrot.lane.b32.xlu0 %v1015, 127
  %v1086 = vpop.permute.xlu0 %1085
  %1087 = vrot.lane.b32.xlu0 %v1016, 127
  %v1088 = vpop.permute.xlu0 %1087
  %v1089 = vsel %vm162, %v1086, %v1088
  %v1090 = vsel %vm162, %v1084, %v1086
  %v1091 = vsel %vm162, %v1082, %v1084
  %v1092 = vsel %vm162, %v1088, %v1082
  %v1093 = vmax.f32 %v985, %v1091
  %v1094 = vmax.f32 %v986, %v1090
  %v1095 = vmax.f32 %v1015, %v1089
  %v1096 = vmax.f32 %v1016, %v1092
  %1097 = vrot.lane.b32.xlu0 %v985, 112
  %v1098 = vpop.permute.xlu0 %1097
  %1099 = vrot.lane.b32.xlu0 %v986, 112
  %v1100 = vpop.permute.xlu0 %1099
  %1101 = vrot.lane.b32.xlu0 %v1015, 112
  %v1102 = vpop.permute.xlu0 %1101
  %1103 = vrot.lane.b32.xlu0 %v1016, 112
  %v1104 = vpop.permute.xlu0 %1103
  %v1105 = vsel %vm188, %v1102, %v1104
  %v1106 = vsel %vm188, %v1100, %v1102
  %v1107 = vsel %vm188, %v1098, %v1100
  %v1108 = vsel %vm188, %v1104, %v1098
  %1109 = vrot.lane.b32.xlu0 %v985, 111
  %v1110 = vpop.permute.xlu0 %1109
  %1111 = vrot.lane.b32.xlu0 %v986, 111
  %v1112 = vpop.permute.xlu0 %1111
  %1113 = vrot.lane.b32.xlu0 %v1015, 111
  %v1114 = vpop.permute.xlu0 %1113
  %1115 = vrot.lane.b32.xlu0 %v1016, 111
  %v1116 = vpop.permute.xlu0 %1115
  %v1117 = vsel %vm201, %v1114, %v1116
  %v1118 = vsel %vm201, %v1112, %v1114
  %v1119 = vsel %vm201, %v1110, %v1112
  %v1120 = vsel %vm201, %v1116, %v1110
  %v1121 = vmax.f32 %v1107, %v1119
  %v1122 = vmax.f32 %v1106, %v1118
  %v1123 = vmax.f32 %v1105, %v1117
  %v1124 = vmax.f32 %v1108, %v1120
  %v1125 = vmax.f32 %v1093, %v1121
  %v1126 = vmax.f32 %v1094, %v1122
  %v1127 = vmax.f32 %v1095, %v1123
  %v1128 = vmax.f32 %v1096, %v1124
  %1129 = vmatpush.msra.mxu0 %v1032
  %1130 = vmatpush.msra.mxu0 %v1031
  %1131 = vmatpush.msra.mxu0 %v1030
  %1132 = vmatpush.msra.mxu0 %v1029
  %1133 = vmatpush.msra.mxu0 %v1028
  %1134 = vmatpush.msra.mxu0 %v1027
  %1135 = vmatpush.msra.mxu0 %v1026
  %1136 = vmatpush.msra.mxu0 %v1025
  %1137 = vmatpush.msra.mxu0 %v1024
  %1138 = vmatpush.msra.mxu0 %v1023
  %1139 = vmatpush.msra.mxu0 %v1022
  %1140 = vmatpush.msra.mxu0 %v1021
  %1141 = vmatpush.msra.mxu0 %v1020
  %1142 = vmatpush.msra.mxu0 %v1019
  %1143 = vmatpush.msra.mxu0 %v1018
  %1144 = vmatpush.msra.mxu0 %v1017
  %1145 = vmatmul.f32.gmra.mxu0 %v1125
  %v1146 = vpop.f32.mrf.mxu0
  %v1147 = vadd.f32 0.0, %v1146
  %1148 = vdwg.mxu0
  %1149 = vmatpush.msra.mxu0 %v1048
  %1150 = vmatpush.msra.mxu0 %v1047
  %1151 = vmatpush.msra.mxu0 %v1046
  %1152 = vmatpush.msra.mxu0 %v1045
  %1153 = vmatpush.msra.mxu0 %v1044
  %1154 = vmatpush.msra.mxu0 %v1043
  %1155 = vmatpush.msra.mxu0 %v1042
  %1156 = vmatpush.msra.mxu0 %v1041
  %1157 = vmatpush.msra.mxu0 %v1040
  %1158 = vmatpush.msra.mxu0 %v1039
  %1159 = vmatpush.msra.mxu0 %v1038
  %1160 = vmatpush.msra.mxu0 %v1037
  %1161 = vmatpush.msra.mxu0 %v1036
  %1162 = vmatpush.msra.mxu0 %v1035
  %1163 = vmatpush.msra.mxu0 %v1034
  %1164 = vmatpush.msra.mxu0 %v1033
  %1165 = vmatmul.f32.gmra.mxu0 %v1126
  %v1166 = vpop.f32.mrf.mxu0
  %v1167 = vadd.f32 %v1147, %v1166
  %1168 = vdwg.mxu0
  %1169 = vmatpush.msra.mxu0 %v1064
  %1170 = vmatpush.msra.mxu0 %v1063
  %1171 = vmatpush.msra.mxu0 %v1062
  %1172 = vmatpush.msra.mxu0 %v1061
  %1173 = vmatpush.msra.mxu0 %v1060
  %1174 = vmatpush.msra.mxu0 %v1059
  %1175 = vmatpush.msra.mxu0 %v1058
  %1176 = vmatpush.msra.mxu0 %v1057
  %1177 = vmatpush.msra.mxu0 %v1056
  %1178 = vmatpush.msra.mxu0 %v1055
  %1179 = vmatpush.msra.mxu0 %v1054
  %1180 = vmatpush.msra.mxu0 %v1053
  %1181 = vmatpush.msra.mxu0 %v1052
  %1182 = vmatpush.msra.mxu0 %v1051
  %1183 = vmatpush.msra.mxu0 %v1050
  %1184 = vmatpush.msra.mxu0 %v1049
  %1185 = vmatmul.f32.gmra.mxu0 %v1127
  %v1186 = vpop.f32.mrf.mxu0
  %v1187 = vadd.f32 %v1167, %v1186
  %1188 = vdwg.mxu0
  %1189 = vmatpush.msra.mxu0 %v1080
  %1190 = vmatpush.msra.mxu0 %v1079
  %1191 = vmatpush.msra.mxu0 %v1078
  %1192 = vmatpush.msra.mxu0 %v1077
  %1193 = vmatpush.msra.mxu0 %v1076
  %1194 = vmatpush.msra.mxu0 %v1075
  %1195 = vmatpush.msra.mxu0 %v1074
  %1196 = vmatpush.msra.mxu0 %v1073
  %1197 = vmatpush.msra.mxu0 %v1072
  %1198 = vmatpush.msra.mxu0 %v1071
  %1199 = vmatpush.msra.mxu0 %v1070
  %1200 = vmatpush.msra.mxu0 %v1069
  %1201 = vmatpush.msra.mxu0 %v1068
  %1202 = vmatpush.msra.mxu0 %v1067
  %1203 = vmatpush.msra.mxu0 %v1066
  %1204 = vmatpush.msra.mxu0 %v1065
  %1205 = vmatmul.f32.gmra.mxu0 %v1128
  %v1206 = vpop.f32.mrf.mxu0
  %v1207 = vadd.f32 %v1187, %v1206
  %1208 = vdwg.mxu0
  %1209 = vst [vmem:[%s6] sm:$0xff] %v1207
  // Predicated region
  $region26: #{layer3_conv.1} parent=0 // pred_check
    _
  $region27: #{layer3_conv.1} parent=0 // pred_check_branch
    %1211 = sbr.rel (0) target = $region29
  $region28: #{layer3_conv.1} parent=0 // pred_region
    _
  $region29: #{layer3_conv.1} parent=0 // pred_fallthru
    _
  // Predicated region
  $region30: #{layer3_conv.1} parent=0 // pred_check
    _
  $region31: #{layer3_conv.1} parent=0 // pred_check_branch
    %1213 = sbr.rel (0) target = $region33
  $region32: #{layer3_conv.1} parent=0 // pred_region
    _
  $region33: #{layer3_conv.1} parent=0 // pred_fallthru
    _

</llo_original>
